<compile_context>
chip_gen: v7x
topology: tpu7x:2x2x1
jax: 0.10.0
libtpu: 0.0.40
codegen_flags: <defaults>
</compile_context>

<pallas_src>
import functools

import numpy as np
import jax
import jax.numpy as jnp
from jax.experimental import pallas as pl
from jax.experimental.pallas import tpu as pltpu


# ----------------------------------------------------------------------------
# Sinusoid positional table (same math as the PyTorch helper).
# ----------------------------------------------------------------------------
def get_sinusoid_encoding_table(n_position, d_model):
    def cal_angle(position, hid_idx):
        return position / np.power(10000, 2 * (hid_idx // 2) / d_model)

    table = np.array(
        [[cal_angle(pos, j) for j in range(d_model)] for pos in range(n_position)],
        dtype=np.float64,
    )
    table[:, 0::2] = np.sin(table[:, 0::2])
    table[:, 1::2] = np.cos(table[:, 1::2])
    return jnp.asarray(table, dtype=jnp.float32)


# ----------------------------------------------------------------------------
# Slab packing: per-entry rows padded to multiples of 8, slab width padded to
# a multiple of 128 (lane-dense loads, no masked column reads in getw/getc).
# ----------------------------------------------------------------------------
def _pack_slab(entries, dtype):
    width = max(int(a.shape[1]) for _, a in entries)
    width = ((width + 127) // 128) * 128
    offs, pieces, r = {}, [], 0
    for name, a in entries:
        a = jnp.asarray(a, jnp.float32)
        h, w = int(a.shape[0]), int(a.shape[1])
        hp = ((h + 7) // 8) * 8
        buf = jnp.zeros((hp, width), jnp.float32).at[:h, :w].set(a)
        offs[name] = (r, h, w)
        pieces.append(buf)
        r += hp
    return jnp.concatenate(pieces, axis=0).astype(dtype), offs


# ----------------------------------------------------------------------------
# Batch-block selection (perf-review guidance).
# ----------------------------------------------------------------------------
def _choose_nb(B, L, nb_cap=None):
    """Pick samples-per-grid-step NB.

    * NB*L near 128-256 rows and NB >= 64 when the batch allows (MXU M-util).
    * For large B keep G >= 2 so both v7x TensorCores get work.
    * NB multiple of 8 whenever G > 1 (sublane rule on the (NB, D) blocks).
    * Keep the in-kernel (NB*L)^2 block-diagonal temporaries bounded (~1 MiB).
    """
    if nb_cap is None:
        nb_cap = max(64, pl.cdiv(256, max(L, 1)))
        nb_cap = min(nb_cap, max(8, 512 // max(L, 1)))
    if B <= nb_cap:
        return B                       # single grid step: blocks == full dims
    nb = min(nb_cap, max(8, B // 2))   # G >= 2 -> v7x megacore sharding
    return max(8, (nb // 8) * 8)


# ----------------------------------------------------------------------------
# Pallas kernel: NB batch samples per grid step, everything 2-D inside.
# ----------------------------------------------------------------------------
def magnn_kernel(a_ref, item_ref, left_ref, user_ref, w2_ref, b2_ref,
                 wref, cref, out_ref, *, w_offs, c_offs, step, L, left, D, H,
                 P, NB, compute_dtype):
    f32 = jnp.float32

    def getw(name):
        r0, h, w = w_offs[name]
        return wref[r0:r0 + h, 0:w]

    def getc(name):
        r0, h, w = c_offs[name]
        return cref[r0:r0 + h, 0:w]

    def mm(a, b):
        # MXU matmul: bf16 operands (MXU-native on v5e/v6e/v7x), f32 accumulate.
        return jnp.dot(a.astype(compute_dtype), b.astype(compute_dtype),
                       preferred_element_type=f32)

    user = user_ref[...].astype(f32)                              # (NB, D)

    # ---- Block-diagonal adjacency, built in VMEM (not in HBM) ---------------
    # A_bd[n*L+i, m*L+k] = A[n, i, k] if n == m else 0
    A_bd = mm(a_ref[0], getc("tile_eye")) * getc("block_mask")    # (NB*L, NB*L)

    # ---- GNN (short-term interest) -------------------------------------------
    # One fused matmul per step: tanh([A@h | h] @ W1), W1 kept intact (2D, D).
    gnn_W1 = getw("gnn_W1")
    sum_L = getc("sum_L")                                         # (NB, NB*L)
    hidden = item_ref[0].astype(f32)                              # (NB*L, D)
    # TODO(synk): switch to lax.fori_loop(..., unroll=True) if `step` grows.
    for _ in range(step):
        in1 = mm(A_bd, hidden)                                    # (NB*L, D)
        hidden = jnp.tanh(mm(jnp.concatenate([in1, hidden], axis=1), gnn_W1))
    short_arg = mm(sum_L, hidden) * (1.0 / L)                     # (NB, D)

    # ---- Long-term multi-head attention --------------------------------------
    LH = left_ref[0].astype(f32) + getc("pos_rep")                # (NB*left, D)
    lu_rep = mm(getc("rep_left"), mm(user, getw("long_W2")))      # (NB*left, D)
    lhh = jnp.tanh(mm(LH, getw("long_W1")) + lu_rep)
    logits = mm(lhh, getw("long_W3"))                             # (NB*left, H)
    logits = logits - jnp.max(logits, axis=-1, keepdims=True)
    e = jnp.exp(logits)
    att = e * pl.reciprocal(jnp.sum(e, axis=-1, keepdims=True), approx=True)
    att_t = att.T                                                 # (H, NB*left)

    # matrix_z[n, :, h] = sum_{l in sample n} att[l, h] * LH[l, :]
    # Scale the (NB, NB*left) selector by the attention row (cheap broadcast)
    # instead of rebuilding the (NB*left, D) operand once per head.
    sum_left = getc("sum_left")
    lq = jnp.zeros((NB, D), f32)
    for hd in range(H):
        lq = lq + jnp.tanh(mm(sum_left * att_t[hd:hd + 1, :], LH))
    long_query = lq * (1.0 / H)                                   # (NB, D)

    # ---- Memory network read --------------------------------------------------
    mlog = mm(long_query, getw("memory_K"))                       # (NB, M)
    mlog = mlog - jnp.max(mlog, axis=-1, keepdims=True)
    me = jnp.exp(mlog)
    mem = me * pl.reciprocal(jnp.sum(me, axis=-1, keepdims=True), approx=True)
    long_embs = long_query + mm(mem, getw("memory_Vt"))           # (NB, D)

    # ---- Fusion gate (three matmuls fused into one, K = 3D) --------------------
    gate_in = jnp.concatenate([short_arg, long_embs, user], axis=1)   # (NB, 3D)
    gate = jax.nn.sigmoid(mm(gate_in, getw("fusion_W")))
    fusion = gate * short_arg + (1.0 - gate) * long_embs              # (NB, D)

    # ---- Prediction scores (train path, for_pred=False) ------------------------
    # score = (user + fusion + mean(item)) @ w2^T + b2   (mean(item@W)=mean(item)@W)
    mean_item = mm(sum_L, item_ref[0]) * (1.0 / L)
    q = user + fusion + mean_item                                     # (NB, D)
    # Kept in f32 so the 0*x masking never meets non-finite cross-sample terms.
    # TODO(synk): tile P on a grid axis instead of this O(NB^2*P) path once the
    # candidate set gets large.
    qw = jax.lax.dot_general(q, w2_ref[0].astype(f32),
                             (((1,), (1,)), ((), ())),
                             preferred_element_type=f32)              # (NB, NB*P)
    score = jnp.dot(qw * getc("score_mask"), getc("score_sel"),
                    preferred_element_type=f32)                       # (NB, P_out)
    out_ref[...] = score + b2_ref[...]


# ----------------------------------------------------------------------------
# Wrapper: batch blocking, strip-form adjacency, slab packing, pallas_call.
# ----------------------------------------------------------------------------
def magnn_forward_pallas(A, item_embs, left_embs, user_emb, w2, b2, params,
                         step, *, nb_cap=None, use_bf16=True):
    B, L, D = item_embs.shape
    left = left_embs.shape[1]
    P = w2.shape[1]
    H = params["long_W3"].shape[1]
    cdt = jnp.bfloat16 if use_bf16 else jnp.float32
    P_out = ((max(P, 1) + 127) // 128) * 128        # lane-dense output block

    NB = _choose_nb(B, L, nb_cap)
    G = pl.cdiv(B, NB)
    B_pad = G * NB
    if B_pad != B:
        pad = B_pad - B
        pad3 = ((0, pad), (0, 0), (0, 0))
        A = jnp.pad(A, pad3)
        item_embs = jnp.pad(item_embs, pad3)
        left_embs = jnp.pad(left_embs, pad3)
        w2 = jnp.pad(w2, pad3)
        user_emb = jnp.pad(user_emb, ((0, pad), (0, 0)))
        b2 = jnp.pad(b2, ((0, pad), (0, 0)))

    NL, NLEFT, NP = NB * L, NB * left, NB * P

    # Streamed per-step inputs, stored bf16 (halves HBM/DMA bytes).
    A_strip = A.reshape(G, NL, L).astype(cdt)          # per-sample adjacencies, stacked
    item_flat = item_embs.reshape(G, NL, D).astype(cdt)
    left_flat = left_embs.reshape(G, NLEFT, D).astype(cdt)
    w2_flat = w2.reshape(G, NP, D).astype(cdt)         # (.., d)-major: no HBM transpose
    user_f = user_emb.astype(jnp.float32)
    b2_pad = jnp.zeros((B_pad, P_out), jnp.float32).at[:, :P].set(
        b2.astype(jnp.float32))

    # Shared model weights (constant index_map -> fetched once, stays resident).
    wslab, w_offs = _pack_slab([
        ("gnn_W1", params["gnn_W1"]),                                   # (2D, D)
        ("long_W1", params["long_W1"]),
        ("long_W2", params["long_W2"]),
        ("long_W3", params["long_W3"]),
        ("memory_K", params["memory_K"]),
        ("memory_Vt", params["memory_V"].T),
        ("fusion_W", jnp.concatenate([params["fusion_W1"], params["fusion_W2"],
                                      params["fusion_W3"]], axis=0)),   # (3D, D)
    ], cdt)

    # NB-scaled structural constants (0/1 selectors, masks, positional tile),
    # also fetched once.  Kept f32 (tiny) so the positional table is exact.
    # TODO(synk): generate these in-kernel from broadcasted_iota to drop their
    # VMEM bytes entirely; kept as a resident slab for lowering portability.
    eye_nb = np.eye(NB, dtype=np.float32)
    cslab, c_offs = _pack_slab([
        ("tile_eye", np.tile(np.eye(L, dtype=np.float32), (1, NB))),      # (L, NL)
        ("block_mask", np.kron(eye_nb, np.ones((L, L), np.float32))),     # (NL, NL)
        ("sum_L", np.repeat(eye_nb, L, axis=1)),                          # (NB, NL)
        ("sum_left", np.repeat(eye_nb, left, axis=1)),                    # (NB, NLEFT)
        ("rep_left", np.repeat(eye_nb, left, axis=0)),                    # (NLEFT, NB)
        ("pos_rep", jnp.tile(params["pos"], (NB, 1))),                    # (NLEFT, D)
        ("score_mask", np.repeat(eye_nb, P, axis=1)),                     # (NB, NP)
        ("score_sel", np.tile(np.eye(P, P_out, dtype=np.float32), (NB, 1))),  # (NP, P_out)
    ], jnp.float32)

    kernel = functools.partial(
        magnn_kernel, w_offs=w_offs, c_offs=c_offs, step=step, L=L, left=left,
        D=D, H=H, P=P, NB=NB, compute_dtype=cdt)

    # Explicit VMEM budget: double-buffered streamed blocks + resident slabs +
    # in-kernel temporaries; capped at 64 MiB so the config stays v7x-valid.
    isz = 2 if use_bf16 else 4
    stream = ((NL * (L + D) + NLEFT * D + NP * D) * isz
              + NB * D * 4 + 2 * NB * P_out * 4)
    resident = wslab.size * isz + cslab.size * 4
    temps = (3 * NL * NL + 6 * NL * 2 * D + 6 * NLEFT * D
             + NB * NP + NP * P_out) * 4
    vmem_limit = int(min(64 << 20,
                         max(16 << 20, 2 * stream + 2 * resident + temps + (2 << 20))))

    out = pl.pallas_call(
        kernel,
        out_shape=jax.ShapeDtypeStruct((B_pad, P_out), jnp.float32),
        grid=(G,),
        in_specs=[
            pl.BlockSpec((1, NL, L), lambda g: (g, 0, 0)),        # A strips
            pl.BlockSpec((1, NL, D), lambda g: (g, 0, 0)),        # item embeddings
            pl.BlockSpec((1, NLEFT, D), lambda g: (g, 0, 0)),     # left embeddings
            pl.BlockSpec((NB, D), lambda g: (g, 0)),              # user embeddings
            pl.BlockSpec((1, NP, D), lambda g: (g, 0, 0)),        # W2 rows
            pl.BlockSpec((NB, P_out), lambda g: (g, 0)),          # b2 (lane-padded)
            pl.BlockSpec(wslab.shape, lambda g: (0, 0)),          # weight slab
            pl.BlockSpec(cslab.shape, lambda g: (0, 0)),          # structure slab
        ],
        out_specs=pl.BlockSpec((NB, P_out), lambda g: (g, 0)),
        compiler_params=pltpu.CompilerParams(
            dimension_semantics=("parallel",),
            vmem_limit_bytes=vmem_limit),
    )(A_strip, item_flat, left_flat, user_f, w2_flat, b2_pad, wslab, cslab)
    return out[:B, :P]


# ----------------------------------------------------------------------------
# Pure-JAX reference (mirrors the PyTorch forward, for_pred=False path).
# ----------------------------------------------------------------------------
def magnn_forward_ref(A, item_embs, left_embs, user_emb, w2, b2, params, step):
    hidden = item_embs
    for _ in range(step):
        in1 = jnp.einsum("bij,bjd->bid", A, hidden)
        cat = jnp.concatenate([in1, hidden], axis=2)
        hidden = jnp.tanh(jnp.einsum("bld,de->ble", cat, params["gnn_W1"]))
    short_arg = jnp.mean(hidden, axis=1)

    long_hidden = left_embs + params["pos"][None]
    lu = user_emb @ params["long_W2"]
    lhh = jnp.tanh(jnp.einsum("bld,de->ble", long_hidden, params["long_W1"])
                   + lu[:, None, :])
    att = jax.nn.softmax(jnp.einsum("bld,dh->blh", lhh, params["long_W3"]), axis=2)
    matrix_z = jnp.einsum("bld,blh->bdh", long_hidden, att)
    long_query = jnp.mean(jnp.tanh(matrix_z), axis=2)
    mem = jax.nn.softmax(long_query @ params["memory_K"], axis=1)
    mem_hidden = mem @ params["memory_V"].T
    long_embs = long_query + mem_hidden

    gate = jax.nn.sigmoid(short_arg @ params["fusion_W1"]
                          + long_embs @ params["fusion_W2"]
                          + user_emb @ params["fusion_W3"])
    fusion = gate * short_arg + (1.0 - gate) * long_embs

    res = jnp.einsum("bpd,bd->bp", w2, user_emb) + b2
    res = res + jnp.einsum("bd,bpd->bp", fusion, w2)
    rel = jnp.einsum("bld,bpd->blp", item_embs, w2)
    res = res + jnp.mean(rel, axis=1)
    return res


# ----------------------------------------------------------------------------
# Deterministic parameter construction + example run.
# ----------------------------------------------------------------------------
def xavier_uniform(key, shape):
    fan_in, fan_out = shape[0], shape[1]
    bound = float(np.sqrt(6.0 / (fan_in + fan_out)))
    return jax.random.uniform(key, shape, jnp.float32, -bound, bound)


if __name__ == "__main__":
    # model_args: L=5, T=3, d=32, h=4, m=8, step=2 ; left_number=8 ; batch=2 ; P=6
    B, L, T, D, H, M, STEP = 2, 5, 3, 32, 4, 8, 2
    TRAIN_LEFT = 8
    P = 6
    NUM_USERS, NUM_ITEMS = 10, 20

    key = jax.random.PRNGKey(0)
    keys = jax.random.split(key, 16)

    params = {
        "gnn_W1": xavier_uniform(keys[0], (2 * D, D)),
        "long_W1": xavier_uniform(keys[1], (D, D)),
        "long_W2": xavier_uniform(keys[2], (D, D)),
        "long_W3": xavier_uniform(keys[3], (D, H)),
        "memory_K": xavier_uniform(keys[4], (D, M)),
        "memory_V": xavier_uniform(keys[5], (D, M)),
        "fusion_W1": xavier_uniform(keys[6], (D, D)),
        "fusion_W2": xavier_uniform(keys[7], (D, D)),
        "fusion_W3": xavier_uniform(keys[8], (D, D)),
        "pos": get_sinusoid_encoding_table(TRAIN_LEFT, D),
    }

    user_table = jax.random.normal(keys[9], (NUM_USERS, D), jnp.float32) / D
    item_table = jax.random.normal(keys[10], (NUM_ITEMS, D), jnp.float32) / D
    W2_table = jax.random.normal(keys[11], (NUM_ITEMS, D), jnp.float32) / D
    W2_table = W2_table.at[0].set(0.0)                     # padding_idx=0
    b2_table = jnp.zeros((NUM_ITEMS, 1), jnp.float32)      # b2 zero-initialized

    item_seq = jax.random.randint(keys[12], (B, L), 1, NUM_ITEMS)
    item_left_seq = jax.random.randint(keys[13], (B, TRAIN_LEFT), 1, NUM_ITEMS)
    user_ids = jax.random.randint(keys[14], (B,), 0, NUM_USERS)
    items_to_predict = jax.random.randint(keys[15], (B, P), 1, NUM_ITEMS)
    A = jax.random.uniform(jax.random.PRNGKey(42), (B, L, L), jnp.float32)
    A = A / jnp.sum(A, axis=-1, keepdims=True)             # row-normalized adjacency

    # Embedding gathers (glue, outside the kernel).
    item_embs = item_table[item_seq]                       # (B, L, d)
    item_left_embs = item_table[item_left_seq]             # (B, left, d)
    user_emb = user_table[user_ids]                        # (B, d)
    w2 = W2_table[items_to_predict]                        # (B, P, d)
    b2 = b2_table[items_to_predict][:, :, 0]               # (B, P)

    out = magnn_forward_pallas(A, item_embs, item_left_embs, user_emb,
                               w2, b2, params, STEP)
    out = jax.block_until_ready(out)

    ref = magnn_forward_ref(A, item_embs, item_left_embs, user_emb,
                            w2, b2, params, STEP)
    assert out.shape == (B, P)
    # bf16 MXU operands / bf16-stored streamed inputs vs. the all-f32 reference.
    assert bool(jnp.allclose(out, ref, atol=2e-2, rtol=2e-2)), "mismatch vs reference"

    print("KERNEL_OK")
</pallas_src>

<mosaic_0001>
module attributes {stable_mosaic.version = 11 : i64} {
  func.func @magnn_kernel(%arg0: i32, %arg1: memref<1x10x5xbf16, #tpu.memory_space<vmem>>, %arg2: memref<1x10x32xbf16, #tpu.memory_space<vmem>>, %arg3: memref<1x16x32xbf16, #tpu.memory_space<vmem>>, %arg4: memref<2x32xf32, #tpu.memory_space<vmem>>, %arg5: memref<1x12x32xbf16, #tpu.memory_space<vmem>>, %arg6: memref<2x128xf32, #tpu.memory_space<vmem>>, %arg7: memref<296x128xbf16, #tpu.memory_space<vmem>>, %arg8: memref<96x128xf32, #tpu.memory_space<vmem>>, %arg9: memref<2x128xf32, #tpu.memory_space<vmem>>) attributes {dimension_semantics = [#tpu.dimension_semantics<parallel>], iteration_bounds = array<i64: 1>, scalar_prefetch = 0 : i64, scratch_operands = 0 : i64, tpu.core_type = #tpu.core_type<tc>, window_params = [{transform_indices = @transform_0, window_bounds = array<i64: 1, 10, 5>}, {transform_indices = @transform_1, window_bounds = array<i64: 1, 10, 32>}, {transform_indices = @transform_2, window_bounds = array<i64: 1, 16, 32>}, {transform_indices = @transform_3, window_bounds = array<i64: 2, 32>}, {transform_indices = @transform_4, window_bounds = array<i64: 1, 12, 32>}, {transform_indices = @transform_5, window_bounds = array<i64: 2, 128>}, {pipeline_mode = #tpu.pipeline_mode<synchronous>, transform_indices = @transform_6, window_bounds = array<i64: 296, 128>}, {pipeline_mode = #tpu.pipeline_mode<synchronous>, transform_indices = @transform_7, window_bounds = array<i64: 96, 128>}, {transform_indices = @transform_8, window_bounds = array<i64: 2, 128>}]} {
    %c0 = arith.constant 0 : index
    %c0_0 = arith.constant 0 : index
    %0 = vector.load %arg4[%c0, %c0_0] : memref<2x32xf32, #tpu.memory_space<vmem>>, vector<2x32xf32>
    %c0_1 = arith.constant 0 : index
    %c0_2 = arith.constant 0 : index
    %c0_3 = arith.constant 0 : index
    %1 = vector.load %arg1[%c0_1, %c0_2, %c0_3] : memref<1x10x5xbf16, #tpu.memory_space<vmem>>, vector<1x10x5xbf16>
    %2 = vector.shape_cast %1 : vector<1x10x5xbf16> to vector<10x5xbf16>
    %c0_4 = arith.constant 0 : index
    %c0_5 = arith.constant 0 : index
    %3 = vector.load %arg8[%c0_4, %c0_5] : memref<96x128xf32, #tpu.memory_space<vmem>>, vector<5x10xf32>
    %4 = arith.truncf %3 : vector<5x10xf32> to vector<5x10xbf16>
    %cst = arith.constant dense<0.000000e+00> : vector<10x10xf32>
    %5 = tpu.matmul %2, %4, %cst {dimension_numbers = #tpu.dot_dimension_numbers<[1], [0], [0], [1], [0, 0, 1, 1], [], []>} : vector<10x5xbf16>, vector<5x10xbf16>, vector<10x10xf32> -> vector<10x10xf32>
    %c8 = arith.constant 8 : index
    %c0_6 = arith.constant 0 : index
    %6 = vector.load %arg8[%c8, %c0_6] : memref<96x128xf32, #tpu.memory_space<vmem>>, vector<10x10xf32>
    %7 = arith.mulf %5, %6 : vector<10x10xf32>
    %c0_7 = arith.constant 0 : index
    %c0_8 = arith.constant 0 : index
    %8 = vector.load %arg7[%c0_7, %c0_8] : memref<296x128xbf16, #tpu.memory_space<vmem>>, vector<64x32xbf16>
    %c24 = arith.constant 24 : index
    %c0_9 = arith.constant 0 : index
    %9 = vector.load %arg8[%c24, %c0_9] : memref<96x128xf32, #tpu.memory_space<vmem>>, vector<2x10xf32>
    %c0_10 = arith.constant 0 : index
    %c0_11 = arith.constant 0 : index
    %c0_12 = arith.constant 0 : index
    %10 = vector.load %arg2[%c0_10, %c0_11, %c0_12] : memref<1x10x32xbf16, #tpu.memory_space<vmem>>, vector<1x10x32xbf16>
    %11 = vector.shape_cast %10 : vector<1x10x32xbf16> to vector<10x32xbf16>
    %12 = arith.extf %11 : vector<10x32xbf16> to vector<10x32xf32>
    %13 = arith.truncf %7 : vector<10x10xf32> to vector<10x10xbf16>
    %14 = arith.truncf %12 : vector<10x32xf32> to vector<10x32xbf16>
    %cst_13 = arith.constant dense<0.000000e+00> : vector<10x32xf32>
    %15 = tpu.matmul %13, %14, %cst_13 {dimension_numbers = #tpu.dot_dimension_numbers<[1], [0], [0], [1], [0, 0, 1, 1], [], []>} : vector<10x10xbf16>, vector<10x32xbf16>, vector<10x32xf32> -> vector<10x32xf32>
    %16 = tpu.concatenate %15, %12 in 1 : vector<10x32xf32>, vector<10x32xf32> -> vector<10x64xf32>
    %17 = arith.truncf %16 : vector<10x64xf32> to vector<10x64xbf16>
    %cst_14 = arith.constant dense<0.000000e+00> : vector<10x32xf32>
    %18 = tpu.matmul %17, %8, %cst_14 {dimension_numbers = #tpu.dot_dimension_numbers<[1], [0], [0], [1], [0, 0, 1, 1], [], []>} : vector<10x64xbf16>, vector<64x32xbf16>, vector<10x32xf32> -> vector<10x32xf32>
    %19 = math.tanh %18 : vector<10x32xf32>
    %20 = arith.truncf %7 : vector<10x10xf32> to vector<10x10xbf16>
    %21 = arith.truncf %19 : vector<10x32xf32> to vector<10x32xbf16>
    %cst_15 = arith.constant dense<0.000000e+00> : vector<10x32xf32>
    %22 = tpu.matmul %20, %21, %cst_15 {dimension_numbers = #tpu.dot_dimension_numbers<[1], [0], [0], [1], [0, 0, 1, 1], [], []>} : vector<10x10xbf16>, vector<10x32xbf16>, vector<10x32xf32> -> vector<10x32xf32>
    %23 = tpu.concatenate %22, %19 in 1 : vector<10x32xf32>, vector<10x32xf32> -> vector<10x64xf32>
    %24 = arith.truncf %23 : vector<10x64xf32> to vector<10x64xbf16>
    %cst_16 = arith.constant dense<0.000000e+00> : vector<10x32xf32>
    %25 = tpu.matmul %24, %8, %cst_16 {dimension_numbers = #tpu.dot_dimension_numbers<[1], [0], [0], [1], [0, 0, 1, 1], [], []>} : vector<10x64xbf16>, vector<64x32xbf16>, vector<10x32xf32> -> vector<10x32xf32>
    %26 = math.tanh %25 : vector<10x32xf32>
    %27 = arith.truncf %9 : vector<2x10xf32> to vector<2x10xbf16>
    %28 = arith.truncf %26 : vector<10x32xf32> to vector<10x32xbf16>
    %cst_17 = arith.constant dense<0.000000e+00> : vector<2x32xf32>
    %29 = tpu.matmul %27, %28, %cst_17 {dimension_numbers = #tpu.dot_dimension_numbers<[1], [0], [0], [1], [0, 0, 1, 1], [], []>} : vector<2x10xbf16>, vector<10x32xbf16>, vector<2x32xf32> -> vector<2x32xf32>
    %cst_18 = arith.constant 2.000000e-01 : f32
    %30 = vector.broadcast %cst_18 : f32 to vector<2x32xf32>
    %31 = arith.mulf %29, %30 : vector<2x32xf32>
    %c0_19 = arith.constant 0 : index
    %c0_20 = arith.constant 0 : index
    %c0_21 = arith.constant 0 : index
    %32 = vector.load %arg3[%c0_19, %c0_20, %c0_21] : memref<1x16x32xbf16, #tpu.memory_space<vmem>>, vector<1x16x32xbf16>
    %33 = vector.shape_cast %32 : vector<1x16x32xbf16> to vector<16x32xbf16>
    %34 = arith.extf %33 : vector<16x32xbf16> to vector<16x32xf32>
    %c56 = arith.constant 56 : index
    %c0_22 = arith.constant 0 : index
    %35 = vector.load %arg8[%c56, %c0_22] : memref<96x128xf32, #tpu.memory_space<vmem>>, vector<16x32xf32>
    %36 = arith.addf %34, %35 : vector<16x32xf32>
    %c40 = arith.constant 40 : index
    %c0_23 = arith.constant 0 : index
    %37 = vector.load %arg8[%c40, %c0_23] : memref<96x128xf32, #tpu.memory_space<vmem>>, vector<16x2xf32>
    %c96 = arith.constant 96 : index
    %c0_24 = arith.constant 0 : index
    %38 = vector.load %arg7[%c96, %c0_24] : memref<296x128xbf16, #tpu.memory_space<vmem>>, vector<32x32xbf16>
    %39 = arith.truncf %0 : vector<2x32xf32> to vector<2x32xbf16>
    %cst_25 = arith.constant dense<0.000000e+00> : vector<2x32xf32>
    %40 = tpu.matmul %39, %38, %cst_25 {dimension_numbers = #tpu.dot_dimension_numbers<[1], [0], [0], [1], [0, 0, 1, 1], [], []>} : vector<2x32xbf16>, vector<32x32xbf16>, vector<2x32xf32> -> vector<2x32xf32>
    %41 = arith.truncf %37 : vector<16x2xf32> to vector<16x2xbf16>
    %42 = arith.truncf %40 : vector<2x32xf32> to vector<2x32xbf16>
    %cst_26 = arith.constant dense<0.000000e+00> : vector<16x32xf32>
    %43 = tpu.matmul %41, %42, %cst_26 {dimension_numbers = #tpu.dot_dimension_numbers<[1], [0], [0], [1], [0, 0, 1, 1], [], []>} : vector<16x2xbf16>, vector<2x32xbf16>, vector<16x32xf32> -> vector<16x32xf32>
    %c64 = arith.constant 64 : index
    %c0_27 = arith.constant 0 : index
    %44 = vector.load %arg7[%c64, %c0_27] : memref<296x128xbf16, #tpu.memory_space<vmem>>, vector<32x32xbf16>
    %45 = arith.truncf %36 : vector<16x32xf32> to vector<16x32xbf16>
    %cst_28 = arith.constant dense<0.000000e+00> : vector<16x32xf32>
    %46 = tpu.matmul %45, %44, %cst_28 {dimension_numbers = #tpu.dot_dimension_numbers<[1], [0], [0], [1], [0, 0, 1, 1], [], []>} : vector<16x32xbf16>, vector<32x32xbf16>, vector<16x32xf32> -> vector<16x32xf32>
    %47 = arith.addf %46, %43 : vector<16x32xf32>
    %48 = math.tanh %47 : vector<16x32xf32>
    %c128 = arith.constant 128 : index
    %c0_29 = arith.constant 0 : index
    %49 = vector.load %arg7[%c128, %c0_29] : memref<296x128xbf16, #tpu.memory_space<vmem>>, vector<32x4xbf16>
    %50 = arith.truncf %48 : vector<16x32xf32> to vector<16x32xbf16>
    %cst_30 = arith.constant dense<0.000000e+00> : vector<16x4xf32>
    %51 = tpu.matmul %50, %49, %cst_30 {dimension_numbers = #tpu.dot_dimension_numbers<[1], [0], [0], [1], [0, 0, 1, 1], [], []>} : vector<16x32xbf16>, vector<32x4xbf16>, vector<16x4xf32> -> vector<16x4xf32>
    %cst_31 = arith.constant dense<0xFF800000> : vector<16xf32>
    %52 = vector.multi_reduction <maximumf>, %51, %cst_31 [1] : vector<16x4xf32> to vector<16xf32>
    %53 = vector.shape_cast %52 : vector<16xf32> to vector<16x1xf32>
    %54 = vector.broadcast %53 : vector<16x1xf32> to vector<16x4xf32>
    %55 = arith.subf %51, %54 : vector<16x4xf32>
    %56 = math.exp %55 : vector<16x4xf32>
    %cst_32 = arith.constant dense<0.000000e+00> : vector<16xf32>
    %57 = vector.multi_reduction <add>, %56, %cst_32 [1] : vector<16x4xf32> to vector<16xf32>
    %58 = vector.shape_cast %57 : vector<16xf32> to vector<16x1xf32>
    %59 = tpu.reciprocal %58 {approx = true} : vector<16x1xf32> -> vector<16x1xf32>
    %60 = vector.broadcast %59 : vector<16x1xf32> to vector<16x4xf32>
    %61 = arith.mulf %56, %60 : vector<16x4xf32>
    %62 = tpu.transpose %61, [1, 0] : vector<16x4xf32> -> vector<4x16xf32>
    %c32 = arith.constant 32 : index
    %c0_33 = arith.constant 0 : index
    %63 = vector.load %arg8[%c32, %c0_33] : memref<96x128xf32, #tpu.memory_space<vmem>>, vector<2x16xf32>
    %cst_34 = arith.constant 0.000000e+00 : f32
    %64 = vector.broadcast %cst_34 : f32 to vector<2x32xf32>
    %65 = vector.extract_strided_slice %62 {offsets = [0, 0], sizes = [1, 16], strides = [1, 1]} : vector<4x16xf32> to vector<1x16xf32>
    %66 = vector.broadcast %65 : vector<1x16xf32> to vector<2x16xf32>
    %67 = arith.mulf %63, %66 : vector<2x16xf32>
    %68 = arith.truncf %67 : vector<2x16xf32> to vector<2x16xbf16>
    %69 = arith.truncf %36 : vector<16x32xf32> to vector<16x32xbf16>
    %cst_35 = arith.constant dense<0.000000e+00> : vector<2x32xf32>
    %70 = tpu.matmul %68, %69, %cst_35 {dimension_numbers = #tpu.dot_dimension_numbers<[1], [0], [0], [1], [0, 0, 1, 1], [], []>} : vector<2x16xbf16>, vector<16x32xbf16>, vector<2x32xf32> -> vector<2x32xf32>
    %71 = math.tanh %70 : vector<2x32xf32>
    %72 = arith.addf %64, %71 : vector<2x32xf32>
    %73 = vector.extract_strided_slice %62 {offsets = [1, 0], sizes = [1, 16], strides = [1, 1]} : vector<4x16xf32> to vector<1x16xf32>
    %74 = vector.broadcast %73 : vector<1x16xf32> to vector<2x16xf32>
    %75 = arith.mulf %63, %74 : vector<2x16xf32>
    %76 = arith.truncf %75 : vector<2x16xf32> to vector<2x16xbf16>
    %77 = arith.truncf %36 : vector<16x32xf32> to vector<16x32xbf16>
    %cst_36 = arith.constant dense<0.000000e+00> : vector<2x32xf32>
    %78 = tpu.matmul %76, %77, %cst_36 {dimension_numbers = #tpu.dot_dimension_numbers<[1], [0], [0], [1], [0, 0, 1, 1], [], []>} : vector<2x16xbf16>, vector<16x32xbf16>, vector<2x32xf32> -> vector<2x32xf32>
    %79 = math.tanh %78 : vector<2x32xf32>
    %80 = arith.addf %72, %79 : vector<2x32xf32>
    %81 = vector.extract_strided_slice %62 {offsets = [2, 0], sizes = [1, 16], strides = [1, 1]} : vector<4x16xf32> to vector<1x16xf32>
    %82 = vector.broadcast %81 : vector<1x16xf32> to vector<2x16xf32>
    %83 = arith.mulf %63, %82 : vector<2x16xf32>
    %84 = arith.truncf %83 : vector<2x16xf32> to vector<2x16xbf16>
    %85 = arith.truncf %36 : vector<16x32xf32> to vector<16x32xbf16>
    %cst_37 = arith.constant dense<0.000000e+00> : vector<2x32xf32>
    %86 = tpu.matmul %84, %85, %cst_37 {dimension_numbers = #tpu.dot_dimension_numbers<[1], [0], [0], [1], [0, 0, 1, 1], [], []>} : vector<2x16xbf16>, vector<16x32xbf16>, vector<2x32xf32> -> vector<2x32xf32>
    %87 = math.tanh %86 : vector<2x32xf32>
    %88 = arith.addf %80, %87 : vector<2x32xf32>
    %89 = vector.extract_strided_slice %62 {offsets = [3, 0], sizes = [1, 16], strides = [1, 1]} : vector<4x16xf32> to vector<1x16xf32>
    %90 = vector.broadcast %89 : vector<1x16xf32> to vector<2x16xf32>
    %91 = arith.mulf %63, %90 : vector<2x16xf32>
    %92 = arith.truncf %91 : vector<2x16xf32> to vector<2x16xbf16>
    %93 = arith.truncf %36 : vector<16x32xf32> to vector<16x32xbf16>
    %cst_38 = arith.constant dense<0.000000e+00> : vector<2x32xf32>
    %94 = tpu.matmul %92, %93, %cst_38 {dimension_numbers = #tpu.dot_dimension_numbers<[1], [0], [0], [1], [0, 0, 1, 1], [], []>} : vector<2x16xbf16>, vector<16x32xbf16>, vector<2x32xf32> -> vector<2x32xf32>
    %95 = math.tanh %94 : vector<2x32xf32>
    %96 = arith.addf %88, %95 : vector<2x32xf32>
    %cst_39 = arith.constant 2.500000e-01 : f32
    %97 = vector.broadcast %cst_39 : f32 to vector<2x32xf32>
    %98 = arith.mulf %96, %97 : vector<2x32xf32>
    %c160 = arith.constant 160 : index
    %c0_40 = arith.constant 0 : index
    %99 = vector.load %arg7[%c160, %c0_40] : memref<296x128xbf16, #tpu.memory_space<vmem>>, vector<32x8xbf16>
    %100 = arith.truncf %98 : vector<2x32xf32> to vector<2x32xbf16>
    %cst_41 = arith.constant dense<0.000000e+00> : vector<2x8xf32>
    %101 = tpu.matmul %100, %99, %cst_41 {dimension_numbers = #tpu.dot_dimension_numbers<[1], [0], [0], [1], [0, 0, 1, 1], [], []>} : vector<2x32xbf16>, vector<32x8xbf16>, vector<2x8xf32> -> vector<2x8xf32>
    %cst_42 = arith.constant dense<0xFF800000> : vector<2xf32>
    %102 = vector.multi_reduction <maximumf>, %101, %cst_42 [1] : vector<2x8xf32> to vector<2xf32>
    %103 = vector.shape_cast %102 : vector<2xf32> to vector<2x1xf32>
    %104 = vector.broadcast %103 : vector<2x1xf32> to vector<2x8xf32>
    %105 = arith.subf %101, %104 : vector<2x8xf32>
    %106 = math.exp %105 : vector<2x8xf32>
    %cst_43 = arith.constant dense<0.000000e+00> : vector<2xf32>
    %107 = vector.multi_reduction <add>, %106, %cst_43 [1] : vector<2x8xf32> to vector<2xf32>
    %108 = vector.shape_cast %107 : vector<2xf32> to vector<2x1xf32>
    %109 = tpu.reciprocal %108 {approx = true} : vector<2x1xf32> -> vector<2x1xf32>
    %110 = vector.broadcast %109 : vector<2x1xf32> to vector<2x8xf32>
    %111 = arith.mulf %106, %110 : vector<2x8xf32>
    %c192 = arith.constant 192 : index
    %c0_44 = arith.constant 0 : index
    %112 = vector.load %arg7[%c192, %c0_44] : memref<296x128xbf16, #tpu.memory_space<vmem>>, vector<8x32xbf16>
    %113 = arith.truncf %111 : vector<2x8xf32> to vector<2x8xbf16>
    %cst_45 = arith.constant dense<0.000000e+00> : vector<2x32xf32>
    %114 = tpu.matmul %113, %112, %cst_45 {dimension_numbers = #tpu.dot_dimension_numbers<[1], [0], [0], [1], [0, 0, 1, 1], [], []>} : vector<2x8xbf16>, vector<8x32xbf16>, vector<2x32xf32> -> vector<2x32xf32>
    %115 = arith.addf %98, %114 : vector<2x32xf32>
    %116 = tpu.concatenate %31, %115, %0 in 1 : vector<2x32xf32>, vector<2x32xf32>, vector<2x32xf32> -> vector<2x96xf32>
    %c200 = arith.constant 200 : index
    %c0_46 = arith.constant 0 : index
    %117 = vector.load %arg7[%c200, %c0_46] : memref<296x128xbf16, #tpu.memory_space<vmem>>, vector<96x32xbf16>
    %118 = arith.truncf %116 : vector<2x96xf32> to vector<2x96xbf16>
    %cst_47 = arith.constant dense<0.000000e+00> : vector<2x32xf32>
    %119 = tpu.matmul %118, %117, %cst_47 {dimension_numbers = #tpu.dot_dimension_numbers<[1], [0], [0], [1], [0, 0, 1, 1], [], []>} : vector<2x96xbf16>, vector<96x32xbf16>, vector<2x32xf32> -> vector<2x32xf32>
    %120 = arith.negf %119 : vector<2x32xf32>
    %121 = math.exp %120 : vector<2x32xf32>
    %cst_48 = arith.constant 1.000000e+00 : f32
    %122 = vector.broadcast %cst_48 : f32 to vector<2x32xf32>
    %123 = arith.addf %122, %121 : vector<2x32xf32>
    %124 = arith.divf %122, %123 : vector<2x32xf32>
    %125 = arith.mulf %124, %31 : vector<2x32xf32>
    %cst_49 = arith.constant 1.000000e+00 : f32
    %126 = vector.broadcast %cst_49 : f32 to vector<2x32xf32>
    %127 = arith.subf %126, %124 : vector<2x32xf32>
    %128 = arith.mulf %127, %115 : vector<2x32xf32>
    %129 = arith.addf %125, %128 : vector<2x32xf32>
    %c0_50 = arith.constant 0 : index
    %c0_51 = arith.constant 0 : index
    %c0_52 = arith.constant 0 : index
    %130 = vector.load %arg2[%c0_50, %c0_51, %c0_52] : memref<1x10x32xbf16, #tpu.memory_space<vmem>>, vector<1x10x32xbf16>
    %131 = vector.shape_cast %130 : vector<1x10x32xbf16> to vector<10x32xbf16>
    %132 = arith.truncf %9 : vector<2x10xf32> to vector<2x10xbf16>
    %cst_53 = arith.constant dense<0.000000e+00> : vector<2x32xf32>
    %133 = tpu.matmul %132, %131, %cst_53 {dimension_numbers = #tpu.dot_dimension_numbers<[1], [0], [0], [1], [0, 0, 1, 1], [], []>} : vector<2x10xbf16>, vector<10x32xbf16>, vector<2x32xf32> -> vector<2x32xf32>
    %cst_54 = arith.constant 2.000000e-01 : f32
    %134 = vector.broadcast %cst_54 : f32 to vector<2x32xf32>
    %135 = arith.mulf %133, %134 : vector<2x32xf32>
    %136 = arith.addf %0, %129 : vector<2x32xf32>
    %137 = arith.addf %136, %135 : vector<2x32xf32>
    %c0_55 = arith.constant 0 : index
    %c0_56 = arith.constant 0 : index
    %c0_57 = arith.constant 0 : index
    %138 = vector.load %arg5[%c0_55, %c0_56, %c0_57] : memref<1x12x32xbf16, #tpu.memory_space<vmem>>, vector<1x12x32xbf16>
    %139 = vector.shape_cast %138 : vector<1x12x32xbf16> to vector<12x32xbf16>
    %140 = arith.extf %139 : vector<12x32xbf16> to vector<12x32xf32>
    %cst_58 = arith.constant dense<0.000000e+00> : vector<2x12xf32>
    %141 = tpu.matmul %137, %140, %cst_58 {dimension_numbers = #tpu.dot_dimension_numbers<[1], [1], [0], [0], [0, 0, 1, 0], [], []>} : vector<2x32xf32>, vector<12x32xf32>, vector<2x12xf32> -> vector<2x12xf32>
    %c72 = arith.constant 72 : index
    %c0_59 = arith.constant 0 : index
    %142 = vector.load %arg8[%c72, %c0_59] : memref<96x128xf32, #tpu.memory_space<vmem>>, vector<2x12xf32>
    %143 = arith.mulf %141, %142 : vector<2x12xf32>
    %c80 = arith.constant 80 : index
    %c0_60 = arith.constant 0 : index
    %144 = vector.load %arg8[%c80, %c0_60] : memref<96x128xf32, #tpu.memory_space<vmem>>, vector<12x128xf32>
    %cst_61 = arith.constant dense<0.000000e+00> : vector<2x128xf32>
    %145 = tpu.matmul %143, %144, %cst_61 {dimension_numbers = #tpu.dot_dimension_numbers<[1], [0], [0], [1], [0, 0, 1, 1], [], []>} : vector<2x12xf32>, vector<12x128xf32>, vector<2x128xf32> -> vector<2x128xf32>
    %c0_62 = arith.constant 0 : index
    %c0_63 = arith.constant 0 : index
    %146 = vector.load %arg6[%c0_62, %c0_63] : memref<2x128xf32, #tpu.memory_space<vmem>>, vector<2x128xf32>
    %147 = arith.addf %145, %146 : vector<2x128xf32>
    %c0_64 = arith.constant 0 : index
    %c0_65 = arith.constant 0 : index
    %148 = vector.load %arg9[%c0_64, %c0_65] : memref<2x128xf32, #tpu.memory_space<vmem>>, vector<2x128xf32>
    tpu.vector_store %arg9[%c0_64, %c0_65], %147 {strides = array<i32>} : memref<2x128xf32, #tpu.memory_space<vmem>>, vector<2x128xf32>,
    return
  }
  func.func @transform_0(%arg0: i32) -> (i32, i32, i32) {
    %c0_i32 = arith.constant 0 : i32
    %c0_i32_0 = arith.constant 0 : i32
    %c0_i32_1 = arith.constant 0 : i32
    return %arg0, %c0_i32, %c0_i32_0 : i32, i32, i32
  }
  func.func @transform_1(%arg0: i32) -> (i32, i32, i32) {
    %c0_i32 = arith.constant 0 : i32
    %c0_i32_0 = arith.constant 0 : i32
    %c0_i32_1 = arith.constant 0 : i32
    return %arg0, %c0_i32, %c0_i32_0 : i32, i32, i32
  }
  func.func @transform_2(%arg0: i32) -> (i32, i32, i32) {
    %c0_i32 = arith.constant 0 : i32
    %c0_i32_0 = arith.constant 0 : i32
    %c0_i32_1 = arith.constant 0 : i32
    return %arg0, %c0_i32, %c0_i32_0 : i32, i32, i32
  }
  func.func @transform_3(%arg0: i32) -> (i32, i32) {
    %c0_i32 = arith.constant 0 : i32
    %c0_i32_0 = arith.constant 0 : i32
    return %arg0, %c0_i32 : i32, i32
  }
  func.func @transform_4(%arg0: i32) -> (i32, i32, i32) {
    %c0_i32 = arith.constant 0 : i32
    %c0_i32_0 = arith.constant 0 : i32
    %c0_i32_1 = arith.constant 0 : i32
    return %arg0, %c0_i32, %c0_i32_0 : i32, i32, i32
  }
  func.func @transform_5(%arg0: i32) -> (i32, i32) {
    %c0_i32 = arith.constant 0 : i32
    %c0_i32_0 = arith.constant 0 : i32
    return %arg0, %c0_i32 : i32, i32
  }
  func.func @transform_6(%arg0: i32) -> (i32, i32) {
    %c0_i32 = arith.constant 0 : i32
    %c0_i32_0 = arith.constant 0 : i32
    %c0_i32_1 = arith.constant 0 : i32
    return %c0_i32, %c0_i32_0 : i32, i32
  }
  func.func @transform_7(%arg0: i32) -> (i32, i32) {
    %c0_i32 = arith.constant 0 : i32
    %c0_i32_0 = arith.constant 0 : i32
    %c0_i32_1 = arith.constant 0 : i32
    return %c0_i32, %c0_i32_0 : i32, i32
  }
  func.func @transform_8(%arg0: i32) -> (i32, i32) {
    %c0_i32 = arith.constant 0 : i32
    %c0_i32_0 = arith.constant 0 : i32
    return %arg0, %c0_i32 : i32, i32
  }
}

</mosaic_0001>

<llo_original>
// kernel: tpu_custom_call.1
$region0: #{tpu_custom_call.1}
  #allocation0 [shape = 'u32[]', space=smem, size = 0x4, offset = 0x4, fixed_abs, tag = 'smem constant byte address 0x4 - core index']
  #allocation1 [shape = 'u32[144,128]{1,0:T(1,128)}', space=vmem, size = 0x12000, scoped, tag = 'internal scratch']
  %s0 = inlined_call_operand.vmem [shape: bf16[1,10,5], index: 0, kind: input, shape index: {}]
  %s1 = inlined_call_operand.vmem [shape: bf16[1,10,32], index: 1, kind: input, shape index: {}]
  %s2 = inlined_call_operand.vmem [shape: bf16[1,16,32], index: 2, kind: input, shape index: {}]
  %s3 = inlined_call_operand.vmem [shape: f32[2,32], index: 3, kind: input, shape index: {}]
  %s4 = inlined_call_operand.vmem [shape: bf16[1,12,32], index: 4, kind: input, shape index: {}]
  %s5 = inlined_call_operand.vmem [shape: f32[2,128], index: 5, kind: input, shape index: {}]
  %s6 = inlined_call_operand.hbm [shape: bf16[296,128], index: 6, kind: input, shape index: {}]
  %s7 = inlined_call_operand.hbm [shape: f32[96,128], index: 7, kind: input, shape index: {}]
  %s8 = inlined_call_operand.hbm [shape: f32[2,128], index: 8, kind: output, shape index: {}]
  %s9 = sld [smem:[#allocation0]]
  $region50: #{tpu_custom_call.1} parent=0
    _
  %s11 = ssub.s32 1, %s9
  %s12 = scalar_select 0, %s11, %s9
  $region1: #{tpu_custom_call.1} parent=0
    #allocation2 [shape = 'u8[75776]{0}', space=vmem, size = 0x12800, scoped, tag = 'input window, operand 6, single buffered']
    #allocation3 [shape = 's32[1]{0}', space=sflag, size = 0x4, scoped, tag = 'scoped memory for tpu_custom_call.1']
    #allocation4 [shape = 's32[1]{0}', space=sflag, size = 0x4, scoped, tag = 'scoped memory for tpu_custom_call.1']
    #allocation5 [shape = 'u8[49152]{0}', space=vmem, size = 0xc000, scoped, tag = 'input window, operand 7, single buffered']
    #allocation6 [shape = 's32[1]{0}', space=sflag, size = 0x4, scoped, tag = 'scoped memory for tpu_custom_call.1']
    #allocation7 [shape = 'u8[1024]{0}', space=vmem, size = 0x400, scoped, tag = 'output window, operand 0, single buffered']
    %13 = vsyncpa [#allocation3], 0
    %14 = vsyncpa [#allocation6], 0
    %15 = vsyncpa [#allocation4], 0
    // Predicated region
    $region2: #{tpu_custom_call.1} parent=1 // pred_check
      _
    $region3: #{tpu_custom_call.1} parent=1 // pred_check_branch
      %17 = sbr.rel (0) target = $region5
    $region4: #{tpu_custom_call.1} parent=1 // pred_region
      _
    $region5: #{tpu_custom_call.1} parent=1 // pred_fallthru
      _
    // Predicated region
    $region6: #{tpu_custom_call.1} parent=1 // pred_check
      _
    $region7: #{tpu_custom_call.1} parent=1 // pred_check_branch
      %19 = sbr.rel (0) target = $region9
    $region8: #{tpu_custom_call.1} parent=1 // pred_region
      _
    $region9: #{tpu_custom_call.1} parent=1 // pred_fallthru
      _
    // Predicated region
    $region10: #{tpu_custom_call.1} parent=1 // pred_check
      _
    $region11: #{tpu_custom_call.1} parent=1 // pred_check_branch
      %21 = sbr.rel (0) target = $region13
    $region12: #{tpu_custom_call.1} parent=1 // pred_region
      _
    $region13: #{tpu_custom_call.1} parent=1 // pred_fallthru
      _
    // Predicated region
    $region14: #{tpu_custom_call.1} parent=1 // pred_check
      _
    $region15: #{tpu_custom_call.1} parent=1 // pred_check_branch
      %23 = sbr.rel (0) target = $region17
    $region16: #{tpu_custom_call.1} parent=1 // pred_region
      _
    $region17: #{tpu_custom_call.1} parent=1 // pred_fallthru
      _
    // Predicated region
    $region18: #{tpu_custom_call.1} parent=1 // pred_check
      _
    $region19: #{tpu_custom_call.1} parent=1 // pred_check_branch
      %25 = sbr.rel (0) target = $region21
    $region20: #{tpu_custom_call.1} parent=1 // pred_region
      _
    $region21: #{tpu_custom_call.1} parent=1 // pred_fallthru
      _
    // Predicated region
    $region22: #{tpu_custom_call.1} parent=1 // pred_check
      _
    $region23: #{tpu_custom_call.1} parent=1 // pred_check_branch
      %27 = sbr.rel (0) target = $region25
    $region24: #{tpu_custom_call.1} parent=1 // pred_region
      _
    $region25: #{tpu_custom_call.1} parent=1 // pred_fallthru
      _
    // Predicated region
    $region26: #{tpu_custom_call.1} parent=1 // pred_check
      _
    $region27: #{tpu_custom_call.1} parent=1 // pred_check_branch
      %29 = sbr.rel (0) target = $region29
    $region28: #{tpu_custom_call.1} parent=1 // pred_region
      %s31 = ssub.s32 2368, 2368
      %32 = vsyncadd [#allocation3], %s31
      %s33 = sshll.u32 [#allocation2], 4
      %s34 = int_to_ptr.vmem [resolvable:$true] %s33
      %39 = dma.hbm_to_vmem [thread:$0]  %s6, 2368, %s34, [#allocation3], 64, 64, 4
    $region29: #{tpu_custom_call.1} parent=1 // pred_fallthru
      _
    // Predicated region
    $region30: #{tpu_custom_call.1} parent=1 // pred_check
      _
    $region31: #{tpu_custom_call.1} parent=1 // pred_check_branch
      %41 = sbr.rel (0) target = $region33
    $region32: #{tpu_custom_call.1} parent=1 // pred_region
      %s43 = ssub.s32 1536, 1536
      %44 = vsyncadd [#allocation6], %s43
      %s45 = sshll.u32 [#allocation5], 4
      %s46 = int_to_ptr.vmem [resolvable:$true] %s45
      %51 = dma.hbm_to_vmem [thread:$0]  %s7, 1536, %s46, [#allocation6], 128, 128, 8
    $region33: #{tpu_custom_call.1} parent=1 // pred_fallthru
      _
    // Predicated region
    $region34: #{tpu_custom_call.1} parent=1 // pred_check
      _
    $region35: #{tpu_custom_call.1} parent=1 // pred_check_branch
      %53 = sbr.rel (0) target = $region37
    $region36: #{tpu_custom_call.1} parent=1 // pred_region
      %54 = dma.done [#allocation3], 2368
    $region37: #{tpu_custom_call.1} parent=1 // pred_fallthru
      _
    // Predicated region
    $region38: #{tpu_custom_call.1} parent=1 // pred_check
      _
    $region39: #{tpu_custom_call.1} parent=1 // pred_check_branch
      %56 = sbr.rel (0) target = $region41
    $region40: #{tpu_custom_call.1} parent=1 // pred_region
      %57 = dma.done [#allocation6], 1536
    $region41: #{tpu_custom_call.1} parent=1 // pred_fallthru
      _
    %v59 = vld [vmem:[%s3] sm:$0x3]
    %v60 = vld [vmem:[%s0] sm:$0xf]
    %v61 = vld [vmem:[%s0 + $0x4] sm:$0x1]
    %v62 = vld [vmem:[#allocation5] sm:$0x1f]
    %v63 = vpack.c.bf16 %v62, %v62
    %v66 = vunpack.c.l.b16 %v60
    %v67 = vunpack.c.l.b16 %v61
    %v68 = vpack.c.b16 %v67, %v66
    %vm69 = vcmask 39936
    %v71 = vsel %vm69, %v68, 0
    %vm73 = vcmask 1041408
    %vm74 = vcmask 1042432
    %v75 = vsel %vm73, 4294967295, 65535
    %v76 = vsel %vm74, %v75, 0
    %v78 = vand.u32 %v63, %v76
    %80 = vmatprep.subr.bf16.mxu0 0
    %81 = vmatpush1.bf16.msra.mxu0 %v78
    %82 = vmatprep.subr.bf16.mxu0 0
    %83 = vmatpush1.bf16.msra.mxu0 0
    %84 = vmatprep.subr.bf16.mxu0 0
    %85 = vmatpush1.bf16.msra.mxu0 0
    %86 = vmatprep.subr.bf16.mxu0 0
    %87 = vmatpush1.bf16.msra.mxu0 0
    %88 = vmatprep.subr.bf16.mxu0 0
    %89 = vmatpush1.bf16.msra.mxu0 0
    %90 = vmatprep.subr.bf16.mxu0 0
    %91 = vmatpush1.bf16.msra.mxu0 0
    %92 = vmatprep.subr.bf16.mxu0 0
    %93 = vmatpush1.bf16.msra.mxu0 0
    %94 = vmatprep.subr.bf16.mxu0 0
    %95 = vmatpush1.bf16.msra.mxu0 0
    %96 = vmatprep.subr.bf16.mxu0 0
    %97 = vmatpush1.bf16.msra.mxu0 0
    %98 = vmatprep.subr.bf16.mxu0 0
    %99 = vmatpush1.bf16.msra.mxu0 0
    %100 = vmatprep.subr.bf16.mxu0 0
    %101 = vmatpush1.bf16.msra.mxu0 0
    %102 = vmatprep.subr.bf16.mxu0 0
    %103 = vmatpush1.bf16.msra.mxu0 0
    %104 = vmatprep.subr.bf16.mxu0 0
    %105 = vmatpush1.bf16.msra.mxu0 0
    %106 = vmatprep.subr.bf16.mxu0 0
    %107 = vmatpush1.bf16.msra.mxu0 0
    %108 = vmatprep.subr.bf16.mxu0 0
    %109 = vmatpush1.bf16.msra.mxu0 0
    %110 = vmatprep.subr.bf16.mxu0 0
    %111 = vmatpush1.bf16.msra.mxu0 0
    %112 = vmatprep.mubr.bf16.mxu0 0
    %113 = vmatmul.mubr.bf16.gmra.mrb[0].mxu0 %v71
    %v114 = vpop.f32.mrb[0].mxu0
    %v115 = vadd.f32 0.0, %v114
    %v116 = vpop.f32.mrb[0].mxu0
    %v117 = vpop.f32.mrb[0].mxu0
    %v118 = vadd.f32 0.0, %v117
    %v119 = vpop.f32.mrb[0].mxu0
    %120 = vdwg.mxu0
    %v121 = vld [vmem:[#allocation5 + $0x8] sm:$0xff]
    %v122 = vld [vmem:[#allocation5 + $0x10] sm:$0x3]
    %v123 = vmul.f32 %v115, %v121
    %v124 = vmul.f32 %v118, %v122
    %v125 = vld [vmem:[#allocation2] sm:$0xf]
    %v126 = vld [vmem:[#allocation2 + $0x4] sm:$0xf]
    %v127 = vld [vmem:[#allocation2 + $0x8] sm:$0xf]
    %v128 = vld [vmem:[#allocation2 + $0xc] sm:$0xf]
    %v129 = vld [vmem:[#allocation2 + $0x10] sm:$0xf]
    %v130 = vld [vmem:[#allocation2 + $0x14] sm:$0xf]
    %v131 = vld [vmem:[#allocation2 + $0x18] sm:$0xf]
    %v132 = vld [vmem:[#allocation2 + $0x1c] sm:$0xf]
    %v133 = vld [vmem:[#allocation5 + $0x18] sm:$0x3]
    %v134 = vld [vmem:[%s1] sm:$0xf]
    %v135 = vld [vmem:[%s1 + $0x4] sm:$0x1]
    %v136 = vunpack.c.l.bf16 %v134
    %v137 = vunpack.c.l.bf16 %v135
    %v138 = vpack.c.bf16 %v124, %v123
    %v141 = vunpack.c.l.b16 %v134
    %v142 = vunpack.c.l.b16 %v135
    %v143 = vpack.c.b16 %v142, %v141
    %vm144 = vcmask 80896
    %v146 = vsel %vm144, %v138, 0
    %vm148 = vcmask 1044480
    %v150 = vsel %vm148, %v143, 0
    %152 = vmatprep.subr.bf16.mxu0 0
    %153 = vmatpush1.bf16.msra.mxu0 %v150
    %154 = vmatprep.subr.bf16.mxu0 0
    %155 = vmatpush1.bf16.msra.mxu0 0
    %156 = vmatprep.subr.bf16.mxu0 0
    %157 = vmatpush1.bf16.msra.mxu0 0
    %158 = vmatprep.subr.bf16.mxu0 0
    %159 = vmatpush1.bf16.msra.mxu0 0
    %160 = vmatprep.subr.bf16.mxu0 0
    %161 = vmatpush1.bf16.msra.mxu0 0
    %162 = vmatprep.subr.bf16.mxu0 0
    %163 = vmatpush1.bf16.msra.mxu0 0
    %164 = vmatprep.subr.bf16.mxu0 0
    %165 = vmatpush1.bf16.msra.mxu0 0
    %166 = vmatprep.subr.bf16.mxu0 0
    %167 = vmatpush1.bf16.msra.mxu0 0
    %168 = vmatprep.subr.bf16.mxu0 0
    %169 = vmatpush1.bf16.msra.mxu0 0
    %170 = vmatprep.subr.bf16.mxu0 0
    %171 = vmatpush1.bf16.msra.mxu0 0
    %172 = vmatprep.subr.bf16.mxu0 0
    %173 = vmatpush1.bf16.msra.mxu0 0
    %174 = vmatprep.subr.bf16.mxu0 0
    %175 = vmatpush1.bf16.msra.mxu0 0
    %176 = vmatprep.subr.bf16.mxu0 0
    %177 = vmatpush1.bf16.msra.mxu0 0
    %178 = vmatprep.subr.bf16.mxu0 0
    %179 = vmatpush1.bf16.msra.mxu0 0
    %180 = vmatprep.subr.bf16.mxu0 0
    %181 = vmatpush1.bf16.msra.mxu0 0
    %182 = vmatprep.subr.bf16.mxu0 0
    %183 = vmatpush1.bf16.msra.mxu0 0
    %184 = vmatprep.mubr.bf16.mxu0 0
    %185 = vmatmul.mubr.bf16.gmra.mrb[0].mxu0 %v146
    %v186 = vpop.f32.mrb[0].mxu0
    %v187 = vadd.f32 0.0, %v186
    %v188 = vpop.f32.mrb[0].mxu0
    %v189 = vpop.f32.mrb[0].mxu0
    %v190 = vadd.f32 0.0, %v189
    %v191 = vpop.f32.mrb[0].mxu0
    %192 = vdwg.mxu0
    %195 = vrot.lane.b32.xlu0 %v136, 32
    %v196 = vpop.permute.xlu0 %195
    %197 = vrot.lane.b32.xlu0 %v137, 32
    %v198 = vpop.permute.xlu0 %197
    %vm201 = vcmask 261120
    %v202 = vsel %vm201, %v187, %v196
    %v203 = vsel %vm201, %v190, %v198
    %v204 = vpack.c.bf16 %v203, %v202
    %v213 = vunpack.c.l.b16 %v125
    %v214 = vunpack.c.l.b16 %v126
    %v215 = vunpack.c.l.b16 %v127
    %v216 = vunpack.c.l.b16 %v128
    %v217 = vunpack.c.l.b16 %v129
    %v218 = vunpack.c.l.b16 %v130
    %v219 = vunpack.c.l.b16 %v131
    %v220 = vunpack.c.l.b16 %v132
    %v221 = vpack.c.b16 %v214, %v213
    %v222 = vpack.c.b16 %v216, %v215
    %v223 = vpack.c.b16 %v218, %v217
    %v224 = vpack.c.b16 %v220, %v219
    %vm229 = vcmask 523264
    %v231 = vsel %vm229, %v204, 0
    %233 = vmatprep.subr.bf16.mxu0 0
    %234 = vmatpush1.bf16.msra.mxu0 %v221
    %235 = vmatprep.subr.bf16.mxu0 0
    %236 = vmatpush1.bf16.msra.mxu0 %v222
    %237 = vmatprep.subr.bf16.mxu0 0
    %238 = vmatpush1.bf16.msra.mxu0 %v223
    %239 = vmatprep.subr.bf16.mxu0 0
    %240 = vmatpush1.bf16.msra.mxu0 %v224
    %241 = vmatprep.subr.bf16.mxu0 0
    %242 = vmatpush1.bf16.msra.mxu0 0
    %243 = vmatprep.subr.bf16.mxu0 0
    %244 = vmatpush1.bf16.msra.mxu0 0
    %245 = vmatprep.subr.bf16.mxu0 0
    %246 = vmatpush1.bf16.msra.mxu0 0
    %247 = vmatprep.subr.bf16.mxu0 0
    %248 = vmatpush1.bf16.msra.mxu0 0
    %249 = vmatprep.subr.bf16.mxu0 0
    %250 = vmatpush1.bf16.msra.mxu0 0
    %251 = vmatprep.subr.bf16.mxu0 0
    %252 = vmatpush1.bf16.msra.mxu0 0
    %253 = vmatprep.subr.bf16.mxu0 0
    %254 = vmatpush1.bf16.msra.mxu0 0
    %255 = vmatprep.subr.bf16.mxu0 0
    %256 = vmatpush1.bf16.msra.mxu0 0
    %257 = vmatprep.subr.bf16.mxu0 0
    %258 = vmatpush1.bf16.msra.mxu0 0
    %259 = vmatprep.subr.bf16.mxu0 0
    %260 = vmatpush1.bf16.msra.mxu0 0
    %261 = vmatprep.subr.bf16.mxu0 0
    %262 = vmatpush1.bf16.msra.mxu0 0
    %263 = vmatprep.subr.bf16.mxu0 0
    %264 = vmatpush1.bf16.msra.mxu0 0
    %265 = vmatprep.mubr.bf16.mxu0 0
    %266 = vmatmul.mubr.bf16.gmra.mrb[0].mxu0 %v231
    %v267 = vpop.f32.mrb[0].mxu0
    %v268 = vadd.f32 0.0, %v267
    %v269 = vpop.f32.mrb[0].mxu0
    %v270 = vpop.f32.mrb[0].mxu0
    %v271 = vadd.f32 0.0, %v270
    %v272 = vpop.f32.mrb[0].mxu0
    %273 = vdwg.mxu0
    %v274 = vtanh.pop %v268
    %v275 = vtanh.pop %v271
    %v276 = vpack.c.bf16 %v275, %v274
    %v278 = vsel %vm148, %v276, 0
    %280 = vmatprep.subr.bf16.mxu0 0
    %281 = vmatpush1.bf16.msra.mxu0 %v278
    %282 = vmatprep.subr.bf16.mxu0 0
    %283 = vmatpush1.bf16.msra.mxu0 0
    %284 = vmatprep.subr.bf16.mxu0 0
    %285 = vmatpush1.bf16.msra.mxu0 0
    %286 = vmatprep.subr.bf16.mxu0 0
    %287 = vmatpush1.bf16.msra.mxu0 0
    %288 = vmatprep.subr.bf16.mxu0 0
    %289 = vmatpush1.bf16.msra.mxu0 0
    %290 = vmatprep.subr.bf16.mxu0 0
    %291 = vmatpush1.bf16.msra.mxu0 0
    %292 = vmatprep.subr.bf16.mxu0 0
    %293 = vmatpush1.bf16.msra.mxu0 0
    %294 = vmatprep.subr.bf16.mxu0 0
    %295 = vmatpush1.bf16.msra.mxu0 0
    %296 = vmatprep.subr.bf16.mxu0 0
    %297 = vmatpush1.bf16.msra.mxu0 0
    %298 = vmatprep.subr.bf16.mxu0 0
    %299 = vmatpush1.bf16.msra.mxu0 0
    %300 = vmatprep.subr.bf16.mxu0 0
    %301 = vmatpush1.bf16.msra.mxu0 0
    %302 = vmatprep.subr.bf16.mxu0 0
    %303 = vmatpush1.bf16.msra.mxu0 0
    %304 = vmatprep.subr.bf16.mxu0 0
    %305 = vmatpush1.bf16.msra.mxu0 0
    %306 = vmatprep.subr.bf16.mxu0 0
    %307 = vmatpush1.bf16.msra.mxu0 0
    %308 = vmatprep.subr.bf16.mxu0 0
    %309 = vmatpush1.bf16.msra.mxu0 0
    %310 = vmatprep.subr.bf16.mxu0 0
    %311 = vmatpush1.bf16.msra.mxu0 0
    %312 = vmatprep.mubr.bf16.mxu0 0
    %313 = vmatmul.mubr.bf16.gmra.mrb[0].mxu0 %v146
    %v314 = vpop.f32.mrb[0].mxu0
    %v315 = vadd.f32 0.0, %v314
    %v316 = vpop.f32.mrb[0].mxu0
    %v317 = vpop.f32.mrb[0].mxu0
    %v318 = vadd.f32 0.0, %v317
    %v319 = vpop.f32.mrb[0].mxu0
    %320 = vdwg.mxu0
    %323 = vrot.lane.b32.xlu0 %v274, 32
    %v324 = vpop.permute.xlu0 %323
    %325 = vrot.lane.b32.xlu0 %v275, 32
    %v326 = vpop.permute.xlu0 %325
    %v329 = vsel %vm201, %v315, %v324
    %v330 = vsel %vm201, %v318, %v326
    %v331 = vpack.c.bf16 %v330, %v329
    %v333 = vsel %vm229, %v331, 0
    %335 = vmatprep.subr.bf16.mxu0 0
    %336 = vmatpush1.bf16.msra.mxu0 %v221
    %337 = vmatprep.subr.bf16.mxu0 0
    %338 = vmatpush1.bf16.msra.mxu0 %v222
    %339 = vmatprep.subr.bf16.mxu0 0
    %340 = vmatpush1.bf16.msra.mxu0 %v223
    %341 = vmatprep.subr.bf16.mxu0 0
    %342 = vmatpush1.bf16.msra.mxu0 %v224
    %343 = vmatprep.subr.bf16.mxu0 0
    %344 = vmatpush1.bf16.msra.mxu0 0
    %345 = vmatprep.subr.bf16.mxu0 0
    %346 = vmatpush1.bf16.msra.mxu0 0
    %347 = vmatprep.subr.bf16.mxu0 0
    %348 = vmatpush1.bf16.msra.mxu0 0
    %349 = vmatprep.subr.bf16.mxu0 0
    %350 = vmatpush1.bf16.msra.mxu0 0
    %351 = vmatprep.subr.bf16.mxu0 0
    %352 = vmatpush1.bf16.msra.mxu0 0
    %353 = vmatprep.subr.bf16.mxu0 0
    %354 = vmatpush1.bf16.msra.mxu0 0
    %355 = vmatprep.subr.bf16.mxu0 0
    %356 = vmatpush1.bf16.msra.mxu0 0
    %357 = vmatprep.subr.bf16.mxu0 0
    %358 = vmatpush1.bf16.msra.mxu0 0
    %359 = vmatprep.subr.bf16.mxu0 0
    %360 = vmatpush1.bf16.msra.mxu0 0
    %361 = vmatprep.subr.bf16.mxu0 0
    %362 = vmatpush1.bf16.msra.mxu0 0
    %363 = vmatprep.subr.bf16.mxu0 0
    %364 = vmatpush1.bf16.msra.mxu0 0
    %365 = vmatprep.subr.bf16.mxu0 0
    %366 = vmatpush1.bf16.msra.mxu0 0
    %367 = vmatprep.mubr.bf16.mxu0 0
    %368 = vmatmul.mubr.bf16.gmra.mrb[0].mxu0 %v333
    %v369 = vpop.f32.mrb[0].mxu0
    %v370 = vadd.f32 0.0, %v369
    %v371 = vpop.f32.mrb[0].mxu0
    %v372 = vpop.f32.mrb[0].mxu0
    %v373 = vadd.f32 0.0, %v372
    %v374 = vpop.f32.mrb[0].mxu0
    %375 = vdwg.mxu0
    %v376 = vtanh.pop %v370
    %v377 = vtanh.pop %v373
    %v378 = vpack.c.bf16 %v133, %v133
    %v379 = vpack.c.bf16 %v377, %v376
    %v381 = vsel %vm144, %v378, 0
    %v384 = vsel %vm148, %v379, 0
    %386 = vmatprep.subr.bf16.mxu0 0
    %387 = vmatpush1.bf16.msra.mxu0 %v384
    %388 = vmatprep.subr.bf16.mxu0 0
    %389 = vmatpush1.bf16.msra.mxu0 0
    %390 = vmatprep.subr.bf16.mxu0 0
    %391 = vmatpush1.bf16.msra.mxu0 0
    %392 = vmatprep.subr.bf16.mxu0 0
    %393 = vmatpush1.bf16.msra.mxu0 0
    %394 = vmatprep.subr.bf16.mxu0 0
    %395 = vmatpush1.bf16.msra.mxu0 0
    %396 = vmatprep.subr.bf16.mxu0 0
    %397 = vmatpush1.bf16.msra.mxu0 0
    %398 = vmatprep.subr.bf16.mxu0 0
    %399 = vmatpush1.bf16.msra.mxu0 0
    %400 = vmatprep.subr.bf16.mxu0 0
    %401 = vmatpush1.bf16.msra.mxu0 0
    %402 = vmatprep.subr.bf16.mxu0 0
    %403 = vmatpush1.bf16.msra.mxu0 0
    %404 = vmatprep.subr.bf16.mxu0 0
    %405 = vmatpush1.bf16.msra.mxu0 0
    %406 = vmatprep.subr.bf16.mxu0 0
    %407 = vmatpush1.bf16.msra.mxu0 0
    %408 = vmatprep.subr.bf16.mxu0 0
    %409 = vmatpush1.bf16.msra.mxu0 0
    %410 = vmatprep.subr.bf16.mxu0 0
    %411 = vmatpush1.bf16.msra.mxu0 0
    %412 = vmatprep.subr.bf16.mxu0 0
    %413 = vmatpush1.bf16.msra.mxu0 0
    %414 = vmatprep.subr.bf16.mxu0 0
    %415 = vmatpush1.bf16.msra.mxu0 0
    %416 = vmatprep.subr.bf16.mxu0 0
    %417 = vmatpush1.bf16.msra.mxu0 0
    %418 = vmatprep.mubr.bf16.mxu0 0
    %419 = vmatmul.mubr.bf16.gmra.mrb[0].mxu0 %v381
    %v420 = vpop.f32.mrb[0].mxu0
    %v421 = vadd.f32 0.0, %v420
    %v422 = vpop.f32.mrb[0].mxu0
    %v423 = vpop.f32.mrb[0].mxu0
    %v424 = vpop.f32.mrb[0].mxu0
    %425 = vdwg.mxu0
    %v426 = vmul.f32 %v421, 0.2
    %v427 = vld [vmem:[%s2] sm:$0xf]
    %v428 = vld [vmem:[%s2 + $0x4] sm:$0xf]
    %v429 = vunpack.c.l.bf16 %v427
    %v430 = vunpack.c.l.bf16 %v428
    %v431 = vld [vmem:[#allocation5 + $0x38] sm:$0xff]
    %v432 = vld [vmem:[#allocation5 + $0x40] sm:$0xff]
    %v433 = vadd.f32 %v429, %v431
    %v434 = vadd.f32 %v430, %v432
    %v435 = vld [vmem:[#allocation5 + $0x28] sm:$0xff]
    %v436 = vld [vmem:[#allocation5 + $0x30] sm:$0xff]
    %v437 = vld [vmem:[#allocation2 + $0x30] sm:$0xf]
    %v438 = vld [vmem:[#allocation2 + $0x34] sm:$0xf]
    %v439 = vld [vmem:[#allocation2 + $0x38] sm:$0xf]
    %v440 = vld [vmem:[#allocation2 + $0x3c] sm:$0xf]
    %v441 = vpack.c.bf16 %v59, %v59
    %v446 = vunpack.c.l.b16 %v437
    %v447 = vunpack.c.l.b16 %v438
    %v448 = vunpack.c.l.b16 %v439
    %v449 = vunpack.c.l.b16 %v440
    %v450 = vpack.c.b16 %v447, %v446
    %v451 = vpack.c.b16 %v449, %v448
    %v455 = vsel %vm201, %v441, 0
    %457 = vmatprep.subr.bf16.mxu0 0
    %458 = vmatpush1.bf16.msra.mxu0 %v450
    %459 = vmatprep.subr.bf16.mxu0 0
    %460 = vmatpush1.bf16.msra.mxu0 %v451
    %461 = vmatprep.subr.bf16.mxu0 0
    %462 = vmatpush1.bf16.msra.mxu0 0
    %463 = vmatprep.subr.bf16.mxu0 0
    %464 = vmatpush1.bf16.msra.mxu0 0
    %465 = vmatprep.subr.bf16.mxu0 0
    %466 = vmatpush1.bf16.msra.mxu0 0
    %467 = vmatprep.subr.bf16.mxu0 0
    %468 = vmatpush1.bf16.msra.mxu0 0
    %469 = vmatprep.subr.bf16.mxu0 0
    %470 = vmatpush1.bf16.msra.mxu0 0
    %471 = vmatprep.subr.bf16.mxu0 0
    %472 = vmatpush1.bf16.msra.mxu0 0
    %473 = vmatprep.subr.bf16.mxu0 0
    %474 = vmatpush1.bf16.msra.mxu0 0
    %475 = vmatprep.subr.bf16.mxu0 0
    %476 = vmatpush1.bf16.msra.mxu0 0
    %477 = vmatprep.subr.bf16.mxu0 0
    %478 = vmatpush1.bf16.msra.mxu0 0
    %479 = vmatprep.subr.bf16.mxu0 0
    %480 = vmatpush1.bf16.msra.mxu0 0
    %481 = vmatprep.subr.bf16.mxu0 0
    %482 = vmatpush1.bf16.msra.mxu0 0
    %483 = vmatprep.subr.bf16.mxu0 0
    %484 = vmatpush1.bf16.msra.mxu0 0
    %485 = vmatprep.subr.bf16.mxu0 0
    %486 = vmatpush1.bf16.msra.mxu0 0
    %487 = vmatprep.subr.bf16.mxu0 0
    %488 = vmatpush1.bf16.msra.mxu0 0
    %489 = vmatprep.mubr.bf16.mxu0 0
    %490 = vmatmul.mubr.bf16.gmra.mrb[0].mxu0 %v455
    %v491 = vpop.f32.mrb[0].mxu0
    %v492 = vadd.f32 0.0, %v491
    %v493 = vpop.f32.mrb[0].mxu0
    %v494 = vpop.f32.mrb[0].mxu0
    %v495 = vpop.f32.mrb[0].mxu0
    %496 = vdwg.mxu0
    %v497 = vpack.c.bf16 %v436, %v435
    %v498 = vpack.c.bf16 %v492, %v492
    %vm499 = vcmask 15360
    %v501 = vsel %vm499, %v497, 0
    %vm503 = vcmask 1040384
    %v505 = vsel %vm503, %v498, 0
    %507 = vmatprep.subr.bf16.mxu0 0
    %508 = vmatpush1.bf16.msra.mxu0 %v505
    %509 = vmatprep.subr.bf16.mxu0 0
    %510 = vmatpush1.bf16.msra.mxu0 0
    %511 = vmatprep.subr.bf16.mxu0 0
    %512 = vmatpush1.bf16.msra.mxu0 0
    %513 = vmatprep.subr.bf16.mxu0 0
    %514 = vmatpush1.bf16.msra.mxu0 0
    %515 = vmatprep.subr.bf16.mxu0 0
    %516 = vmatpush1.bf16.msra.mxu0 0
    %517 = vmatprep.subr.bf16.mxu0 0
    %518 = vmatpush1.bf16.msra.mxu0 0
    %519 = vmatprep.subr.bf16.mxu0 0
    %520 = vmatpush1.bf16.msra.mxu0 0
    %521 = vmatprep.subr.bf16.mxu0 0
    %522 = vmatpush1.bf16.msra.mxu0 0
    %523 = vmatprep.subr.bf16.mxu0 0
    %524 = vmatpush1.bf16.msra.mxu0 0
    %525 = vmatprep.subr.bf16.mxu0 0
    %526 = vmatpush1.bf16.msra.mxu0 0
    %527 = vmatprep.subr.bf16.mxu0 0
    %528 = vmatpush1.bf16.msra.mxu0 0
    %529 = vmatprep.subr.bf16.mxu0 0
    %530 = vmatpush1.bf16.msra.mxu0 0
    %531 = vmatprep.subr.bf16.mxu0 0
    %532 = vmatpush1.bf16.msra.mxu0 0
    %533 = vmatprep.subr.bf16.mxu0 0
    %534 = vmatpush1.bf16.msra.mxu0 0
    %535 = vmatprep.subr.bf16.mxu0 0
    %536 = vmatpush1.bf16.msra.mxu0 0
    %537 = vmatprep.subr.bf16.mxu0 0
    %538 = vmatpush1.bf16.msra.mxu0 0
    %539 = vmatprep.mubr.bf16.mxu0 0
    %540 = vmatmul.mubr.bf16.gmra.mrb[0].mxu0 %v501
    %v541 = vpop.f32.mrb[0].mxu0
    %v542 = vadd.f32 0.0, %v541
    %v543 = vpop.f32.mrb[0].mxu0
    %v544 = vpop.f32.mrb[0].mxu0
    %v545 = vadd.f32 0.0, %v544
    %v546 = vpop.f32.mrb[0].mxu0
    %547 = vdwg.mxu0
    %v548 = vld [vmem:[#allocation2 + $0x20] sm:$0xf]
    %v549 = vld [vmem:[#allocation2 + $0x24] sm:$0xf]
    %v550 = vld [vmem:[#allocation2 + $0x28] sm:$0xf]
    %v551 = vld [vmem:[#allocation2 + $0x2c] sm:$0xf]
    %v552 = vpack.c.bf16 %v434, %v433
    %v557 = vunpack.c.l.b16 %v548
    %v558 = vunpack.c.l.b16 %v549
    %v559 = vunpack.c.l.b16 %v550
    %v560 = vunpack.c.l.b16 %v551
    %v561 = vpack.c.b16 %v558, %v557
    %v562 = vpack.c.b16 %v560, %v559
    %v566 = vsel %vm201, %v552, 0
    %568 = vmatprep.subr.bf16.mxu0 0
    %569 = vmatpush1.bf16.msra.mxu0 %v561
    %570 = vmatprep.subr.bf16.mxu0 0
    %571 = vmatpush1.bf16.msra.mxu0 %v562
    %572 = vmatprep.subr.bf16.mxu0 0
    %573 = vmatpush1.bf16.msra.mxu0 0
    %574 = vmatprep.subr.bf16.mxu0 0
    %575 = vmatpush1.bf16.msra.mxu0 0
    %576 = vmatprep.subr.bf16.mxu0 0
    %577 = vmatpush1.bf16.msra.mxu0 0
    %578 = vmatprep.subr.bf16.mxu0 0
    %579 = vmatpush1.bf16.msra.mxu0 0
    %580 = vmatprep.subr.bf16.mxu0 0
    %581 = vmatpush1.bf16.msra.mxu0 0
    %582 = vmatprep.subr.bf16.mxu0 0
    %583 = vmatpush1.bf16.msra.mxu0 0
    %584 = vmatprep.subr.bf16.mxu0 0
    %585 = vmatpush1.bf16.msra.mxu0 0
    %586 = vmatprep.subr.bf16.mxu0 0
    %587 = vmatpush1.bf16.msra.mxu0 0
    %588 = vmatprep.subr.bf16.mxu0 0
    %589 = vmatpush1.bf16.msra.mxu0 0
    %590 = vmatprep.subr.bf16.mxu0 0
    %591 = vmatpush1.bf16.msra.mxu0 0
    %592 = vmatprep.subr.bf16.mxu0 0
    %593 = vmatpush1.bf16.msra.mxu0 0
    %594 = vmatprep.subr.bf16.mxu0 0
    %595 = vmatpush1.bf16.msra.mxu0 0
    %596 = vmatprep.subr.bf16.mxu0 0
    %597 = vmatpush1.bf16.msra.mxu0 0
    %598 = vmatprep.subr.bf16.mxu0 0
    %599 = vmatpush1.bf16.msra.mxu0 0
    %600 = vmatprep.mubr.bf16.mxu0 0
    %601 = vmatmul.mubr.bf16.gmra.mrb[0].mxu0 %v566
    %v602 = vpop.f32.mrb[0].mxu0
    %v603 = vadd.f32 %v542, %v602
    %v604 = vpop.f32.mrb[0].mxu0
    %v605 = vpop.f32.mrb[0].mxu0
    %v606 = vadd.f32 %v545, %v605
    %v607 = vpop.f32.mrb[0].mxu0
    %608 = vdwg.mxu0
    %v609 = vtanh.pop %v603
    %v610 = vtanh.pop %v606
    %v611 = vld [vmem:[#allocation2 + $0x40] sm:$0xf]
    %v612 = vld [vmem:[#allocation2 + $0x44] sm:$0xf]
    %v613 = vld [vmem:[#allocation2 + $0x48] sm:$0xf]
    %v614 = vld [vmem:[#allocation2 + $0x4c] sm:$0xf]
    %v615 = vpack.c.bf16 %v610, %v609
    %v620 = vunpack.c.l.b16 %v611
    %v621 = vunpack.c.l.b16 %v612
    %v622 = vunpack.c.l.b16 %v613
    %v623 = vunpack.c.l.b16 %v614
    %v624 = vpack.c.b16 %v621, %v620
    %v625 = vpack.c.b16 %v623, %v622
    %v629 = vsel %vm201, %v615, 0
    %631 = vmatprep.subr.bf16.mxu0 0
    %632 = vmatpush1.bf16.msra.mxu0 %v624
    %633 = vmatprep.subr.bf16.mxu0 0
    %634 = vmatpush1.bf16.msra.mxu0 %v625
    %635 = vmatprep.subr.bf16.mxu0 0
    %636 = vmatpush1.bf16.msra.mxu0 0
    %637 = vmatprep.subr.bf16.mxu0 0
    %638 = vmatpush1.bf16.msra.mxu0 0
    %639 = vmatprep.subr.bf16.mxu0 0
    %640 = vmatpush1.bf16.msra.mxu0 0
    %641 = vmatprep.subr.bf16.mxu0 0
    %642 = vmatpush1.bf16.msra.mxu0 0
    %643 = vmatprep.subr.bf16.mxu0 0
    %644 = vmatpush1.bf16.msra.mxu0 0
    %645 = vmatprep.subr.bf16.mxu0 0
    %646 = vmatpush1.bf16.msra.mxu0 0
    %647 = vmatprep.subr.bf16.mxu0 0
    %648 = vmatpush1.bf16.msra.mxu0 0
    %649 = vmatprep.subr.bf16.mxu0 0
    %650 = vmatpush1.bf16.msra.mxu0 0
    %651 = vmatprep.subr.bf16.mxu0 0
    %652 = vmatpush1.bf16.msra.mxu0 0
    %653 = vmatprep.subr.bf16.mxu0 0
    %654 = vmatpush1.bf16.msra.mxu0 0
    %655 = vmatprep.subr.bf16.mxu0 0
    %656 = vmatpush1.bf16.msra.mxu0 0
    %657 = vmatprep.subr.bf16.mxu0 0
    %658 = vmatpush1.bf16.msra.mxu0 0
    %659 = vmatprep.subr.bf16.mxu0 0
    %660 = vmatpush1.bf16.msra.mxu0 0
    %661 = vmatprep.subr.bf16.mxu0 0
    %662 = vmatpush1.bf16.msra.mxu0 0
    %663 = vmatprep.mubr.bf16.mxu0 0
    %664 = vmatmul.mubr.bf16.gmra.mrb[0].mxu0 %v629
    %v665 = vpop.f32.mrb[0].mxu0
    %v666 = vadd.f32 0.0, %v665
    %v667 = vpop.f32.mrb[0].mxu0
    %v668 = vpop.f32.mrb[0].mxu0
    %v669 = vadd.f32 0.0, %v668
    %v670 = vpop.f32.mrb[0].mxu0
    %671 = vdwg.mxu0
    %vm672 = vcmask 31744
    %v673 = vsel %vm672, %v666, -inf
    %674 = vmax.xlane.f32.xlu0 %v673
    %v675 = vpop.xlane.xlu0 %674
    %v676 = vsel %vm672, %v669, -inf
    %677 = vmax.xlane.f32.xlu0 %v676
    %v678 = vpop.xlane.xlu0 %677
    %v679 = vsub.f32 %v666, %v675
    %v680 = vsub.f32 %v669, %v678
    %v681 = vmul.f32 %v679, 1.442695
    %v682 = vpow.pop %v681
    %v683 = vmul.f32 %v680, 1.442695
    %v684 = vpow.pop %v683
    %v685 = vsel %vm672, %v682, 0.0
    %686 = vadd.xlane.f32.xlu0 %v685
    %v687 = vpop.xlane.xlu0 %686
    %v688 = vsel %vm672, %v684, 0.0
    %689 = vadd.xlane.f32.xlu0 %v688
    %v690 = vpop.xlane.xlu0 %689
    %v691 = vrcp.pop %v687
    %v692 = vrcp.pop %v690
    %v693 = vmul.f32 %v682, %v691
    %v694 = vmul.f32 %v684, %v692
    %695 = vxpose.xlu0.b32.start [1/16] %v693, 128
    %696 = vxpose.xlu0.b32.cont [2/16] %v694, 128
    %697 = vxpose.xlu0.b32.cont [3/16] 0.0, 128
    %698 = vxpose.xlu0.b32.cont [4/16] 0.0, 128
    %699 = vxpose.xlu0.b32.cont [5/16] 0.0, 128
    %700 = vxpose.xlu0.b32.cont [6/16] 0.0, 128
    %701 = vxpose.xlu0.b32.cont [7/16] 0.0, 128
    %702 = vxpose.xlu0.b32.cont [8/16] 0.0, 128
    %703 = vxpose.xlu0.b32.cont [9/16] 0.0, 128
    %704 = vxpose.xlu0.b32.cont [10/16] 0.0, 128
    %705 = vxpose.xlu0.b32.cont [11/16] 0.0, 128
    %706 = vxpose.xlu0.b32.cont [12/16] 0.0, 128
    %707 = vxpose.xlu0.b32.cont [13/16] 0.0, 128
    %708 = vxpose.xlu0.b32.cont [14/16] 0.0, 128
    %709 = vxpose.xlu0.b32.cont [15/16] 0.0, 128
    %710 = vxpose.xlu0.b32.end [16/16] 0.0, 128
    %v711 = vpop.trf.xlu0
    %v712 = vpop.trf.xlu0
    %v713 = vpop.trf.xlu0
    %v714 = vpop.trf.xlu0
    %v715 = vpop.trf.xlu0
    %v716 = vpop.trf.xlu0
    %v717 = vpop.trf.xlu0
    %v718 = vpop.trf.xlu0
    %v719 = vpop.trf.xlu0
    %v720 = vpop.trf.xlu0
    %v721 = vpop.trf.xlu0
    %v722 = vpop.trf.xlu0
    %v723 = vpop.trf.xlu0
    %v724 = vpop.trf.xlu0
    %v725 = vpop.trf.xlu0
    %v726 = vpop.trf.xlu0
    %v727 = vld [vmem:[#allocation5 + $0x20] sm:$0x3]
    %v728 = vlaneseq
    %v729 = vshrl.u32 %v728, 7
    %v730 = vsub.s32 0, %v729
    %v731 = vrot.slane %v711, %v730
    %v732 = vmul.f32 %v727, %v731
    %v733 = vpack.c.bf16 %v732, %v732
    %vm734 = vcmask 130048
    %v736 = vsel %vm734, %v733, 0
    %738 = vmatprep.subr.bf16.mxu0 0
    %739 = vmatpush1.bf16.msra.mxu0 %v552
    %740 = vmatprep.subr.bf16.mxu0 0
    %741 = vmatpush1.bf16.msra.mxu0 0
    %742 = vmatprep.subr.bf16.mxu0 0
    %743 = vmatpush1.bf16.msra.mxu0 0
    %744 = vmatprep.subr.bf16.mxu0 0
    %745 = vmatpush1.bf16.msra.mxu0 0
    %746 = vmatprep.subr.bf16.mxu0 0
    %747 = vmatpush1.bf16.msra.mxu0 0
    %748 = vmatprep.subr.bf16.mxu0 0
    %749 = vmatpush1.bf16.msra.mxu0 0
    %750 = vmatprep.subr.bf16.mxu0 0
    %751 = vmatpush1.bf16.msra.mxu0 0
    %752 = vmatprep.subr.bf16.mxu0 0
    %753 = vmatpush1.bf16.msra.mxu0 0
    %754 = vmatprep.subr.bf16.mxu0 0
    %755 = vmatpush1.bf16.msra.mxu0 0
    %756 = vmatprep.subr.bf16.mxu0 0
    %757 = vmatpush1.bf16.msra.mxu0 0
    %758 = vmatprep.subr.bf16.mxu0 0
    %759 = vmatpush1.bf16.msra.mxu0 0
    %760 = vmatprep.subr.bf16.mxu0 0
    %761 = vmatpush1.bf16.msra.mxu0 0
    %762 = vmatprep.subr.bf16.mxu0 0
    %763 = vmatpush1.bf16.msra.mxu0 0
    %764 = vmatprep.subr.bf16.mxu0 0
    %765 = vmatpush1.bf16.msra.mxu0 0
    %766 = vmatprep.subr.bf16.mxu0 0
    %767 = vmatpush1.bf16.msra.mxu0 0
    %768 = vmatprep.subr.bf16.mxu0 0
    %769 = vmatpush1.bf16.msra.mxu0 0
    %770 = vmatprep.mubr.bf16.mxu0 0
    %771 = vmatmul.mubr.bf16.gmra.mrb[0].mxu0 %v736
    %v772 = vpop.f32.mrb[0].mxu0
    %v773 = vadd.f32 0.0, %v772
    %v774 = vpop.f32.mrb[0].mxu0
    %v775 = vpop.f32.mrb[0].mxu0
    %v776 = vpop.f32.mrb[0].mxu0
    %777 = vdwg.mxu0
    %v778 = vtanh.pop %v773
    %v779 = vadd.f32 %v778, 0.0
    %v780 = vlaneseq
    %v781 = vshrl.u32 %v780, 7
    %v782 = vsub.s32 1, %v781
    %v783 = vrot.slane %v711, %v782
    %v784 = vmul.f32 %v727, %v783
    %v785 = vpack.c.bf16 %v784, %v784
    %v787 = vsel %vm734, %v785, 0
    %789 = vmatprep.subr.bf16.mxu0 0
    %790 = vmatpush1.bf16.msra.mxu0 %v552
    %791 = vmatprep.subr.bf16.mxu0 0
    %792 = vmatpush1.bf16.msra.mxu0 0
    %793 = vmatprep.subr.bf16.mxu0 0
    %794 = vmatpush1.bf16.msra.mxu0 0
    %795 = vmatprep.subr.bf16.mxu0 0
    %796 = vmatpush1.bf16.msra.mxu0 0
    %797 = vmatprep.subr.bf16.mxu0 0
    %798 = vmatpush1.bf16.msra.mxu0 0
    %799 = vmatprep.subr.bf16.mxu0 0
    %800 = vmatpush1.bf16.msra.mxu0 0
    %801 = vmatprep.subr.bf16.mxu0 0
    %802 = vmatpush1.bf16.msra.mxu0 0
    %803 = vmatprep.subr.bf16.mxu0 0
    %804 = vmatpush1.bf16.msra.mxu0 0
    %805 = vmatprep.subr.bf16.mxu0 0
    %806 = vmatpush1.bf16.msra.mxu0 0
    %807 = vmatprep.subr.bf16.mxu0 0
    %808 = vmatpush1.bf16.msra.mxu0 0
    %809 = vmatprep.subr.bf16.mxu0 0
    %810 = vmatpush1.bf16.msra.mxu0 0
    %811 = vmatprep.subr.bf16.mxu0 0
    %812 = vmatpush1.bf16.msra.mxu0 0
    %813 = vmatprep.subr.bf16.mxu0 0
    %814 = vmatpush1.bf16.msra.mxu0 0
    %815 = vmatprep.subr.bf16.mxu0 0
    %816 = vmatpush1.bf16.msra.mxu0 0
    %817 = vmatprep.subr.bf16.mxu0 0
    %818 = vmatpush1.bf16.msra.mxu0 0
    %819 = vmatprep.subr.bf16.mxu0 0
    %820 = vmatpush1.bf16.msra.mxu0 0
    %821 = vmatprep.mubr.bf16.mxu0 0
    %822 = vmatmul.mubr.bf16.gmra.mrb[0].mxu0 %v787
    %v823 = vpop.f32.mrb[0].mxu0
    %v824 = vadd.f32 0.0, %v823
    %v825 = vpop.f32.mrb[0].mxu0
    %v826 = vpop.f32.mrb[0].mxu0
    %v827 = vpop.f32.mrb[0].mxu0
    %828 = vdwg.mxu0
    %v829 = vtanh.pop %v824
    %v830 = vadd.f32 %v779, %v829
    %v831 = vlaneseq
    %v832 = vshrl.u32 %v831, 7
    %v833 = vsub.s32 2, %v832
    %v834 = vrot.slane %v711, %v833
    %v835 = vmul.f32 %v727, %v834
    %v836 = vpack.c.bf16 %v835, %v835
    %v838 = vsel %vm734, %v836, 0
    %840 = vmatprep.subr.bf16.mxu0 0
    %841 = vmatpush1.bf16.msra.mxu0 %v552
    %842 = vmatprep.subr.bf16.mxu0 0
    %843 = vmatpush1.bf16.msra.mxu0 0
    %844 = vmatprep.subr.bf16.mxu0 0
    %845 = vmatpush1.bf16.msra.mxu0 0
    %846 = vmatprep.subr.bf16.mxu0 0
    %847 = vmatpush1.bf16.msra.mxu0 0
    %848 = vmatprep.subr.bf16.mxu0 0
    %849 = vmatpush1.bf16.msra.mxu0 0
    %850 = vmatprep.subr.bf16.mxu0 0
    %851 = vmatpush1.bf16.msra.mxu0 0
    %852 = vmatprep.subr.bf16.mxu0 0
    %853 = vmatpush1.bf16.msra.mxu0 0
    %854 = vmatprep.subr.bf16.mxu0 0
    %855 = vmatpush1.bf16.msra.mxu0 0
    %856 = vmatprep.subr.bf16.mxu0 0
    %857 = vmatpush1.bf16.msra.mxu0 0
    %858 = vmatprep.subr.bf16.mxu0 0
    %859 = vmatpush1.bf16.msra.mxu0 0
    %860 = vmatprep.subr.bf16.mxu0 0
    %861 = vmatpush1.bf16.msra.mxu0 0
    %862 = vmatprep.subr.bf16.mxu0 0
    %863 = vmatpush1.bf16.msra.mxu0 0
    %864 = vmatprep.subr.bf16.mxu0 0
    %865 = vmatpush1.bf16.msra.mxu0 0
    %866 = vmatprep.subr.bf16.mxu0 0
    %867 = vmatpush1.bf16.msra.mxu0 0
    %868 = vmatprep.subr.bf16.mxu0 0
    %869 = vmatpush1.bf16.msra.mxu0 0
    %870 = vmatprep.subr.bf16.mxu0 0
    %871 = vmatpush1.bf16.msra.mxu0 0
    %872 = vmatprep.mubr.bf16.mxu0 0
    %873 = vmatmul.mubr.bf16.gmra.mrb[0].mxu0 %v838
    %v874 = vpop.f32.mrb[0].mxu0
    %v875 = vadd.f32 0.0, %v874
    %v876 = vpop.f32.mrb[0].mxu0
    %v877 = vpop.f32.mrb[0].mxu0
    %v878 = vpop.f32.mrb[0].mxu0
    %879 = vdwg.mxu0
    %v880 = vtanh.pop %v875
    %v881 = vadd.f32 %v830, %v880
    %v882 = vlaneseq
    %v883 = vshrl.u32 %v882, 7
    %v884 = vsub.s32 3, %v883
    %v885 = vrot.slane %v711, %v884
    %v886 = vmul.f32 %v727, %v885
    %v887 = vpack.c.bf16 %v886, %v886
    %v889 = vsel %vm734, %v887, 0
    %891 = vmatprep.subr.bf16.mxu0 0
    %892 = vmatpush1.bf16.msra.mxu0 %v552
    %893 = vmatprep.subr.bf16.mxu0 0
    %894 = vmatpush1.bf16.msra.mxu0 0
    %895 = vmatprep.subr.bf16.mxu0 0
    %896 = vmatpush1.bf16.msra.mxu0 0
    %897 = vmatprep.subr.bf16.mxu0 0
    %898 = vmatpush1.bf16.msra.mxu0 0
    %899 = vmatprep.subr.bf16.mxu0 0
    %900 = vmatpush1.bf16.msra.mxu0 0
    %901 = vmatprep.subr.bf16.mxu0 0
    %902 = vmatpush1.bf16.msra.mxu0 0
    %903 = vmatprep.subr.bf16.mxu0 0
    %904 = vmatpush1.bf16.msra.mxu0 0
    %905 = vmatprep.subr.bf16.mxu0 0
    %906 = vmatpush1.bf16.msra.mxu0 0
    %907 = vmatprep.subr.bf16.mxu0 0
    %908 = vmatpush1.bf16.msra.mxu0 0
    %909 = vmatprep.subr.bf16.mxu0 0
    %910 = vmatpush1.bf16.msra.mxu0 0
    %911 = vmatprep.subr.bf16.mxu0 0
    %912 = vmatpush1.bf16.msra.mxu0 0
    %913 = vmatprep.subr.bf16.mxu0 0
    %914 = vmatpush1.bf16.msra.mxu0 0
    %915 = vmatprep.subr.bf16.mxu0 0
    %916 = vmatpush1.bf16.msra.mxu0 0
    %917 = vmatprep.subr.bf16.mxu0 0
    %918 = vmatpush1.bf16.msra.mxu0 0
    %919 = vmatprep.subr.bf16.mxu0 0
    %920 = vmatpush1.bf16.msra.mxu0 0
    %921 = vmatprep.subr.bf16.mxu0 0
    %922 = vmatpush1.bf16.msra.mxu0 0
    %923 = vmatprep.mubr.bf16.mxu0 0
    %924 = vmatmul.mubr.bf16.gmra.mrb[0].mxu0 %v889
    %v925 = vpop.f32.mrb[0].mxu0
    %v926 = vadd.f32 0.0, %v925
    %v927 = vpop.f32.mrb[0].mxu0
    %v928 = vpop.f32.mrb[0].mxu0
    %v929 = vpop.f32.mrb[0].mxu0
    %930 = vdwg.mxu0
    %v931 = vtanh.pop %v926
    %v932 = vadd.f32 %v881, %v931
    %v933 = vmul.f32 %v932, 0.25
    %v934 = vld [vmem:[#allocation2 + $0x50] sm:$0xf]
    %v935 = vld [vmem:[#allocation2 + $0x54] sm:$0xf]
    %v936 = vld [vmem:[#allocation2 + $0x58] sm:$0xf]
    %v937 = vld [vmem:[#allocation2 + $0x5c] sm:$0xf]
    %v938 = vpack.c.bf16 %v933, %v933
    %v943 = vunpack.c.l.b16 %v934
    %v944 = vunpack.c.l.b16 %v935
    %v945 = vunpack.c.l.b16 %v936
    %v946 = vunpack.c.l.b16 %v937
    %v947 = vpack.c.b16 %v944, %v943
    %v948 = vpack.c.b16 %v946, %v945
    %v952 = vsel %vm201, %v938, 0
    %954 = vmatprep.subr.bf16.mxu0 0
    %955 = vmatpush1.bf16.msra.mxu0 %v947
    %956 = vmatprep.subr.bf16.mxu0 0
    %957 = vmatpush1.bf16.msra.mxu0 %v948
    %958 = vmatprep.subr.bf16.mxu0 0
    %959 = vmatpush1.bf16.msra.mxu0 0
    %960 = vmatprep.subr.bf16.mxu0 0
    %961 = vmatpush1.bf16.msra.mxu0 0
    %962 = vmatprep.subr.bf16.mxu0 0
    %963 = vmatpush1.bf16.msra.mxu0 0
    %964 = vmatprep.subr.bf16.mxu0 0
    %965 = vmatpush1.bf16.msra.mxu0 0
    %966 = vmatprep.subr.bf16.mxu0 0
    %967 = vmatpush1.bf16.msra.mxu0 0
    %968 = vmatprep.subr.bf16.mxu0 0
    %969 = vmatpush1.bf16.msra.mxu0 0
    %970 = vmatprep.subr.bf16.mxu0 0
    %971 = vmatpush1.bf16.msra.mxu0 0
    %972 = vmatprep.subr.bf16.mxu0 0
    %973 = vmatpush1.bf16.msra.mxu0 0
    %974 = vmatprep.subr.bf16.mxu0 0
    %975 = vmatpush1.bf16.msra.mxu0 0
    %976 = vmatprep.subr.bf16.mxu0 0
    %977 = vmatpush1.bf16.msra.mxu0 0
    %978 = vmatprep.subr.bf16.mxu0 0
    %979 = vmatpush1.bf16.msra.mxu0 0
    %980 = vmatprep.subr.bf16.mxu0 0
    %981 = vmatpush1.bf16.msra.mxu0 0
    %982 = vmatprep.subr.bf16.mxu0 0
    %983 = vmatpush1.bf16.msra.mxu0 0
    %984 = vmatprep.subr.bf16.mxu0 0
    %985 = vmatpush1.bf16.msra.mxu0 0
    %986 = vmatprep.mubr.bf16.mxu0 0
    %987 = vmatmul.mubr.bf16.gmra.mrb[0].mxu0 %v952
    %v988 = vpop.f32.mrb[0].mxu0
    %v989 = vadd.f32 0.0, %v988
    %v990 = vpop.f32.mrb[0].mxu0
    %v991 = vpop.f32.mrb[0].mxu0
    %v992 = vpop.f32.mrb[0].mxu0
    %993 = vdwg.mxu0
    %vm994 = vcmask 58368
    %v995 = vsel %vm994, %v989, -inf
    %996 = vmax.xlane.f32.xlu0 %v995
    %v997 = vpop.xlane.xlu0 %996
    %v998 = vsub.f32 %v989, %v997
    %v999 = vmul.f32 %v998, 1.442695
    %v1000 = vpow.pop %v999
    %v1001 = vsel %vm994, %v1000, 0.0
    %1002 = vadd.xlane.f32.xlu0 %v1001
    %v1003 = vpop.xlane.xlu0 %1002
    %v1004 = vrcp.pop %v1003
    %v1005 = vmul.f32 %v1000, %v1004
    %v1006 = vld [vmem:[#allocation2 + $0x60] sm:$0xf]
    %v1007 = vpack.c.bf16 %v1005, %v1005
    %vm1008 = vcmask 64512
    %v1010 = vsel %vm1008, %v1007, 0
    %vm1012 = vcmask 1043456
    %v1014 = vsel %vm1012, %v1006, 0
    %1016 = vmatprep.subr.bf16.mxu0 0
    %1017 = vmatpush1.bf16.msra.mxu0 %v1014
    %1018 = vmatprep.subr.bf16.mxu0 0
    %1019 = vmatpush1.bf16.msra.mxu0 0
    %1020 = vmatprep.subr.bf16.mxu0 0
    %1021 = vmatpush1.bf16.msra.mxu0 0
    %1022 = vmatprep.subr.bf16.mxu0 0
    %1023 = vmatpush1.bf16.msra.mxu0 0
    %1024 = vmatprep.subr.bf16.mxu0 0
    %1025 = vmatpush1.bf16.msra.mxu0 0
    %1026 = vmatprep.subr.bf16.mxu0 0
    %1027 = vmatpush1.bf16.msra.mxu0 0
    %1028 = vmatprep.subr.bf16.mxu0 0
    %1029 = vmatpush1.bf16.msra.mxu0 0
    %1030 = vmatprep.subr.bf16.mxu0 0
    %1031 = vmatpush1.bf16.msra.mxu0 0
    %1032 = vmatprep.subr.bf16.mxu0 0
    %1033 = vmatpush1.bf16.msra.mxu0 0
    %1034 = vmatprep.subr.bf16.mxu0 0
    %1035 = vmatpush1.bf16.msra.mxu0 0
    %1036 = vmatprep.subr.bf16.mxu0 0
    %1037 = vmatpush1.bf16.msra.mxu0 0
    %1038 = vmatprep.subr.bf16.mxu0 0
    %1039 = vmatpush1.bf16.msra.mxu0 0
    %1040 = vmatprep.subr.bf16.mxu0 0
    %1041 = vmatpush1.bf16.msra.mxu0 0
    %1042 = vmatprep.subr.bf16.mxu0 0
    %1043 = vmatpush1.bf16.msra.mxu0 0
    %1044 = vmatprep.subr.bf16.mxu0 0
    %1045 = vmatpush1.bf16.msra.mxu0 0
    %1046 = vmatprep.subr.bf16.mxu0 0
    %1047 = vmatpush1.bf16.msra.mxu0 0
    %1048 = vmatprep.mubr.bf16.mxu0 0
    %1049 = vmatmul.mubr.bf16.gmra.mrb[0].mxu0 %v1010
    %v1050 = vpop.f32.mrb[0].mxu0
    %v1051 = vadd.f32 0.0, %v1050
    %v1052 = vpop.f32.mrb[0].mxu0
    %v1053 = vpop.f32.mrb[0].mxu0
    %v1054 = vpop.f32.mrb[0].mxu0
    %1055 = vdwg.mxu0
    %v1056 = vadd.f32 %v933, %v1051
    %1058 = vrot.lane.b32.xlu0 %v1056, 32
    %v1059 = vpop.permute.xlu0 %1058
    %1062 = vrot.lane.b32.xlu0 %v59, 64
    %v1063 = vpop.permute.xlu0 %1062
    %v1065 = vsel %vm201, %v426, %v1059
    %v1066 = vsel %vm229, %v1065, %v1063
    %v1067 = vld [vmem:[#allocation2 + $0x64] sm:$0xf]
    %v1068 = vld [vmem:[#allocation2 + $0x68] sm:$0xf]
    %v1069 = vld [vmem:[#allocation2 + $0x6c] sm:$0xf]
    %v1070 = vld [vmem:[#allocation2 + $0x70] sm:$0xf]
    %v1071 = vld [vmem:[#allocation2 + $0x74] sm:$0xf]
    %v1072 = vld [vmem:[#allocation2 + $0x78] sm:$0xf]
    %v1073 = vld [vmem:[#allocation2 + $0x7c] sm:$0xf]
    %v1074 = vld [vmem:[#allocation2 + $0x80] sm:$0xf]
    %v1075 = vld [vmem:[#allocation2 + $0x84] sm:$0xf]
    %v1076 = vld [vmem:[#allocation2 + $0x88] sm:$0xf]
    %v1077 = vld [vmem:[#allocation2 + $0x8c] sm:$0xf]
    %v1078 = vld [vmem:[#allocation2 + $0x90] sm:$0xf]
    %v1079 = vpack.c.bf16 %v1066, %v1066
    %v1092 = vunpack.c.l.b16 %v1067
    %v1093 = vunpack.c.l.b16 %v1068
    %v1094 = vunpack.c.l.b16 %v1069
    %v1095 = vunpack.c.l.b16 %v1070
    %v1096 = vunpack.c.l.b16 %v1071
    %v1097 = vunpack.c.l.b16 %v1072
    %v1098 = vunpack.c.l.b16 %v1073
    %v1099 = vunpack.c.l.b16 %v1074
    %v1100 = vunpack.c.l.b16 %v1075
    %v1101 = vunpack.c.l.b16 %v1076
    %v1102 = vunpack.c.l.b16 %v1077
    %v1103 = vunpack.c.l.b16 %v1078
    %v1104 = vpack.c.b16 %v1093, %v1092
    %v1105 = vpack.c.b16 %v1095, %v1094
    %v1106 = vpack.c.b16 %v1097, %v1096
    %v1107 = vpack.c.b16 %v1099, %v1098
    %v1108 = vpack.c.b16 %v1101, %v1100
    %v1109 = vpack.c.b16 %v1103, %v1102
    %vm1116 = vcmask 785408
    %v1118 = vsel %vm1116, %v1079, 0
    %1120 = vmatprep.subr.bf16.mxu0 0
    %1121 = vmatpush1.bf16.msra.mxu0 %v1104
    %1122 = vmatprep.subr.bf16.mxu0 0
    %1123 = vmatpush1.bf16.msra.mxu0 %v1105
    %1124 = vmatprep.subr.bf16.mxu0 0
    %1125 = vmatpush1.bf16.msra.mxu0 %v1106
    %1126 = vmatprep.subr.bf16.mxu0 0
    %1127 = vmatpush1.bf16.msra.mxu0 %v1107
    %1128 = vmatprep.subr.bf16.mxu0 0
    %1129 = vmatpush1.bf16.msra.mxu0 %v1108
    %1130 = vmatprep.subr.bf16.mxu0 0
    %1131 = vmatpush1.bf16.msra.mxu0 %v1109
    %1132 = vmatprep.subr.bf16.mxu0 0
    %1133 = vmatpush1.bf16.msra.mxu0 0
    %1134 = vmatprep.subr.bf16.mxu0 0
    %1135 = vmatpush1.bf16.msra.mxu0 0
    %1136 = vmatprep.subr.bf16.mxu0 0
    %1137 = vmatpush1.bf16.msra.mxu0 0
    %1138 = vmatprep.subr.bf16.mxu0 0
    %1139 = vmatpush1.bf16.msra.mxu0 0
    %1140 = vmatprep.subr.bf16.mxu0 0
    %1141 = vmatpush1.bf16.msra.mxu0 0
    %1142 = vmatprep.subr.bf16.mxu0 0
    %1143 = vmatpush1.bf16.msra.mxu0 0
    %1144 = vmatprep.subr.bf16.mxu0 0
    %1145 = vmatpush1.bf16.msra.mxu0 0
    %1146 = vmatprep.subr.bf16.mxu0 0
    %1147 = vmatpush1.bf16.msra.mxu0 0
    %1148 = vmatprep.subr.bf16.mxu0 0
    %1149 = vmatpush1.bf16.msra.mxu0 0
    %1150 = vmatprep.subr.bf16.mxu0 0
    %1151 = vmatpush1.bf16.msra.mxu0 0
    %1152 = vmatprep.mubr.bf16.mxu0 0
    %1153 = vmatmul.mubr.bf16.gmra.mrb[0].mxu0 %v1118
    %v1154 = vpop.f32.mrb[0].mxu0
    %v1155 = vadd.f32 0.0, %v1154
    %v1156 = vpop.f32.mrb[0].mxu0
    %v1157 = vpop.f32.mrb[0].mxu0
    %v1158 = vpop.f32.mrb[0].mxu0
    %1159 = vdwg.mxu0
    %v1160 = vxor.u32 %v1155, 2147483648
    %v1161 = vmul.f32 %v1160, 1.442695
    %v1162 = vpow.pop %v1161
    %v1163 = vadd.f32 %v1162, 1.0
    %v1164 = vrcp.pop %v1163
    %v1165 = vmul.f32 1.0, %v1164
    %v1166 = vmul.f32 %v1165, %v426
    %v1167 = vsub.f32 1.0, %v1165
    %v1168 = vmul.f32 %v1167, %v1056
    %v1169 = vadd.f32 %v1166, %v1168
    %1170 = vmatprep.subr.bf16.mxu0 0
    %1171 = vmatpush1.bf16.msra.mxu0 %v150
    %1172 = vmatprep.subr.bf16.mxu0 0
    %1173 = vmatpush1.bf16.msra.mxu0 0
    %1174 = vmatprep.subr.bf16.mxu0 0
    %1175 = vmatpush1.bf16.msra.mxu0 0
    %1176 = vmatprep.subr.bf16.mxu0 0
    %1177 = vmatpush1.bf16.msra.mxu0 0
    %1178 = vmatprep.subr.bf16.mxu0 0
    %1179 = vmatpush1.bf16.msra.mxu0 0
    %1180 = vmatprep.subr.bf16.mxu0 0
    %1181 = vmatpush1.bf16.msra.mxu0 0
    %1182 = vmatprep.subr.bf16.mxu0 0
    %1183 = vmatpush1.bf16.msra.mxu0 0
    %1184 = vmatprep.subr.bf16.mxu0 0
    %1185 = vmatpush1.bf16.msra.mxu0 0
    %1186 = vmatprep.subr.bf16.mxu0 0
    %1187 = vmatpush1.bf16.msra.mxu0 0
    %1188 = vmatprep.subr.bf16.mxu0 0
    %1189 = vmatpush1.bf16.msra.mxu0 0
    %1190 = vmatprep.subr.bf16.mxu0 0
    %1191 = vmatpush1.bf16.msra.mxu0 0
    %1192 = vmatprep.subr.bf16.mxu0 0
    %1193 = vmatpush1.bf16.msra.mxu0 0
    %1194 = vmatprep.subr.bf16.mxu0 0
    %1195 = vmatpush1.bf16.msra.mxu0 0
    %1196 = vmatprep.subr.bf16.mxu0 0
    %1197 = vmatpush1.bf16.msra.mxu0 0
    %1198 = vmatprep.subr.bf16.mxu0 0
    %1199 = vmatpush1.bf16.msra.mxu0 0
    %1200 = vmatprep.subr.bf16.mxu0 0
    %1201 = vmatpush1.bf16.msra.mxu0 0
    %1202 = vmatprep.mubr.bf16.mxu0 0
    %1203 = vmatmul.mubr.bf16.gmra.mrb[0].mxu0 %v381
    %v1204 = vpop.f32.mrb[0].mxu0
    %v1205 = vadd.f32 0.0, %v1204
    %v1206 = vpop.f32.mrb[0].mxu0
    %v1207 = vpop.f32.mrb[0].mxu0
    %v1208 = vpop.f32.mrb[0].mxu0
    %1209 = vdwg.mxu0
    %v1210 = vmul.f32 %v1205, 0.2
    %v1211 = vadd.f32 %v59, %v1169
    %v1212 = vadd.f32 %v1211, %v1210
    %v1213 = vld [vmem:[%s4] sm:$0xf]
    %v1214 = vld [vmem:[%s4 + $0x4] sm:$0x3]
    %v1215 = vunpack.c.l.bf16 %v1213
    %v1216 = vunpack.c.l.bf16 %v1214
    %v1218 = vsel %vm201, %v1212, 0
    %v1221 = vsel %vm201, %v1215, 0
    %v1224 = vsel %vm201, %v1216, 0
    %1226 = vmatprep.subr.mxu0 0.0
    %1227 = vmatpush1.xpose.msra.mxu0 %v1221
    %1228 = vmatprep.subr.mxu0 0.0
    %1229 = vmatpush1.xpose.msra.mxu0 %v1224
    %1230 = vmatprep.subr.mxu0 0.0
    %1231 = vmatpush1.xpose.msra.mxu0 0.0
    %1232 = vmatprep.subr.mxu0 0.0
    %1233 = vmatpush1.xpose.msra.mxu0 0.0
    %1234 = vmatprep.subr.mxu0 0.0
    %1235 = vmatpush1.xpose.msra.mxu0 0.0
    %1236 = vmatprep.subr.mxu0 0.0
    %1237 = vmatpush1.xpose.msra.mxu0 0.0
    %1238 = vmatprep.subr.mxu0 0.0
    %1239 = vmatpush1.xpose.msra.mxu0 0.0
    %1240 = vmatprep.subr.mxu0 0.0
    %1241 = vmatpush1.xpose.msra.mxu0 0.0
    %1242 = vmatprep.subr.mxu0 0.0
    %1243 = vmatpush1.xpose.msra.mxu0 0.0
    %1244 = vmatprep.subr.mxu0 0.0
    %1245 = vmatpush1.xpose.msra.mxu0 0.0
    %1246 = vmatprep.subr.mxu0 0.0
    %1247 = vmatpush1.xpose.msra.mxu0 0.0
    %1248 = vmatprep.subr.mxu0 0.0
    %1249 = vmatpush1.xpose.msra.mxu0 0.0
    %1250 = vmatprep.subr.mxu0 0.0
    %1251 = vmatpush1.xpose.msra.mxu0 0.0
    %1252 = vmatprep.subr.mxu0 0.0
    %1253 = vmatpush1.xpose.msra.mxu0 0.0
    %1254 = vmatprep.subr.mxu0 0.0
    %1255 = vmatpush1.xpose.msra.mxu0 0.0
    %1256 = vmatprep.subr.mxu0 0.0
    %1257 = vmatpush1.xpose.msra.mxu0 0.0
    %1258 = vmatprep.subr.mxu0 0.0
    %1259 = vmatpush1.xpose.msra.mxu0 0.0
    %1260 = vmatprep.subr.mxu0 0.0
    %1261 = vmatpush1.xpose.msra.mxu0 0.0
    %1262 = vmatprep.subr.mxu0 0.0
    %1263 = vmatpush1.xpose.msra.mxu0 0.0
    %1264 = vmatprep.subr.mxu0 0.0
    %1265 = vmatpush1.xpose.msra.mxu0 0.0
    %1266 = vmatprep.subr.mxu0 0.0
    %1267 = vmatpush1.xpose.msra.mxu0 0.0
    %1268 = vmatprep.subr.mxu0 0.0
    %1269 = vmatpush1.xpose.msra.mxu0 0.0
    %1270 = vmatprep.subr.mxu0 0.0
    %1271 = vmatpush1.xpose.msra.mxu0 0.0
    %1272 = vmatprep.subr.mxu0 0.0
    %1273 = vmatpush1.xpose.msra.mxu0 0.0
    %1274 = vmatprep.subr.mxu0 0.0
    %1275 = vmatpush1.xpose.msra.mxu0 0.0
    %1276 = vmatprep.subr.mxu0 0.0
    %1277 = vmatpush1.xpose.msra.mxu0 0.0
    %1278 = vmatprep.subr.mxu0 0.0
    %1279 = vmatpush1.xpose.msra.mxu0 0.0
    %1280 = vmatprep.subr.mxu0 0.0
    %1281 = vmatpush1.xpose.msra.mxu0 0.0
    %1282 = vmatprep.subr.mxu0 0.0
    %1283 = vmatpush1.xpose.msra.mxu0 0.0
    %1284 = vmatprep.subr.mxu0 0.0
    %1285 = vmatpush1.xpose.msra.mxu0 0.0
    %1286 = vmatprep.subr.mxu0 0.0
    %1287 = vmatpush1.xpose.msra.mxu0 0.0
    %1288 = vmatprep.subr.mxu0 0.0
    %1289 = vmatpush1.xpose.msra.mxu0 0.0
    %1290 = vmatprep.mubr.f32.mxu0 0.0
    %1291 = vmatmul.mubr.f32.gmra.mrb[0].mxu0 %v1218
    %v1292 = vpop.f32.mrb[0].mxu0
    %v1293 = vadd.f32 0.0, %v1292
    %v1294 = vpop.f32.mrb[0].mxu0
    %1295 = vdwg.mxu0
    %v1296 = vld [vmem:[#allocation5 + $0x48] sm:$0x3]
    %v1297 = vmul.f32 %v1293, %v1296
    %v1298 = vld [vmem:[#allocation5 + $0x50] sm:$0xff]
    %v1299 = vld [vmem:[#allocation5 + $0x58] sm:$0xf]
    %v1300 = vld [vmem:[%s5] sm:$0x3]
    %vm1301 = vcmask 97280
    %v1303 = vsel %vm1301, %v1297, 0
    %v1306 = vsel %vm1012, %v1299, 0
    %1308 = vmatprep.subr.mxu0 0.0
    %1309 = vmatpush1.msra.mxu0 %v1298
    %1310 = vmatprep.subr.mxu0 0.0
    %1311 = vmatpush1.msra.mxu0 %v1306
    %1312 = vmatprep.subr.mxu0 0.0
    %1313 = vmatpush1.msra.mxu0 0.0
    %1314 = vmatprep.subr.mxu0 0.0
    %1315 = vmatpush1.msra.mxu0 0.0
    %1316 = vmatprep.subr.mxu0 0.0
    %1317 = vmatpush1.msra.mxu0 0.0
    %1318 = vmatprep.subr.mxu0 0.0
    %1319 = vmatpush1.msra.mxu0 0.0
    %1320 = vmatprep.subr.mxu0 0.0
    %1321 = vmatpush1.msra.mxu0 0.0
    %1322 = vmatprep.subr.mxu0 0.0
    %1323 = vmatpush1.msra.mxu0 0.0
    %1324 = vmatprep.subr.mxu0 0.0
    %1325 = vmatpush1.msra.mxu0 0.0
    %1326 = vmatprep.subr.mxu0 0.0
    %1327 = vmatpush1.msra.mxu0 0.0
    %1328 = vmatprep.subr.mxu0 0.0
    %1329 = vmatpush1.msra.mxu0 0.0
    %1330 = vmatprep.subr.mxu0 0.0
    %1331 = vmatpush1.msra.mxu0 0.0
    %1332 = vmatprep.subr.mxu0 0.0
    %1333 = vmatpush1.msra.mxu0 0.0
    %1334 = vmatprep.subr.mxu0 0.0
    %1335 = vmatpush1.msra.mxu0 0.0
    %1336 = vmatprep.subr.mxu0 0.0
    %1337 = vmatpush1.msra.mxu0 0.0
    %1338 = vmatprep.subr.mxu0 0.0
    %1339 = vmatpush1.msra.mxu0 0.0
    %1340 = vmatprep.subr.mxu0 0.0
    %1341 = vmatpush1.msra.mxu0 0.0
    %1342 = vmatprep.subr.mxu0 0.0
    %1343 = vmatpush1.msra.mxu0 0.0
    %1344 = vmatprep.subr.mxu0 0.0
    %1345 = vmatpush1.msra.mxu0 0.0
    %1346 = vmatprep.subr.mxu0 0.0
    %1347 = vmatpush1.msra.mxu0 0.0
    %1348 = vmatprep.subr.mxu0 0.0
    %1349 = vmatpush1.msra.mxu0 0.0
    %1350 = vmatprep.subr.mxu0 0.0
    %1351 = vmatpush1.msra.mxu0 0.0
    %1352 = vmatprep.subr.mxu0 0.0
    %1353 = vmatpush1.msra.mxu0 0.0
    %1354 = vmatprep.subr.mxu0 0.0
    %1355 = vmatpush1.msra.mxu0 0.0
    %1356 = vmatprep.subr.mxu0 0.0
    %1357 = vmatpush1.msra.mxu0 0.0
    %1358 = vmatprep.subr.mxu0 0.0
    %1359 = vmatpush1.msra.mxu0 0.0
    %1360 = vmatprep.subr.mxu0 0.0
    %1361 = vmatpush1.msra.mxu0 0.0
    %1362 = vmatprep.subr.mxu0 0.0
    %1363 = vmatpush1.msra.mxu0 0.0
    %1364 = vmatprep.subr.mxu0 0.0
    %1365 = vmatpush1.msra.mxu0 0.0
    %1366 = vmatprep.subr.mxu0 0.0
    %1367 = vmatpush1.msra.mxu0 0.0
    %1368 = vmatprep.subr.mxu0 0.0
    %1369 = vmatpush1.msra.mxu0 0.0
    %1370 = vmatprep.subr.mxu0 0.0
    %1371 = vmatpush1.msra.mxu0 0.0
    %1372 = vmatprep.mubr.f32.mxu0 0.0
    %1373 = vmatmul.mubr.f32.gmra.mrb[0].mxu0 %v1303
    %v1374 = vpop.f32.mrb[0].mxu0
    %v1375 = vadd.f32 %v1300, %v1374
    %v1376 = vpop.f32.mrb[0].mxu0
    %1377 = vdwg.mxu0
    %1378 = vst [vmem:[#allocation7] sm:$0x3] %v1375
    // Predicated region
    $region42: #{tpu_custom_call.1} parent=1 // pred_check
      _
    $region43: #{tpu_custom_call.1} parent=1 // pred_check_branch
      %1380 = sbr.rel (0) target = $region45
    $region44: #{tpu_custom_call.1} parent=1 // pred_region
      %s1382 = ssub.s32 32, 32
      %1383 = vsyncadd [#allocation4], %s1382
      %s1385 = sshll.u32 [#allocation7], 4
      %s1386 = int_to_ptr.vmem [resolvable:$true] %s1385
      %1388 = dma.vmem_to_hbm [thread:$0]  %s1386, 32, %s8, [#allocation4]
    $region45: #{tpu_custom_call.1} parent=1 // pred_fallthru
      _
    // Predicated region
    $region46: #{tpu_custom_call.1} parent=1 // pred_check
      _
    $region47: #{tpu_custom_call.1} parent=1 // pred_check_branch
      %1390 = sbr.rel (0) target = $region49
    $region48: #{tpu_custom_call.1} parent=1 // pred_region
      %1391 = dma.done [#allocation4], 32
    $region49: #{tpu_custom_call.1} parent=1 // pred_fallthru
      _
    %1392 = vsyncpa [#allocation3], 1
    %1393 = vsyncpa [#allocation6], 1
    %1394 = vsyncpa [#allocation4], 1

</llo_original>
